<compile_context>
chip_gen: v7x
topology: tpu7x:2x2x1
jax: 0.10.0
libtpu: 0.0.40
codegen_flags: <defaults>
</compile_context>

<pallas_src>
import math
import numpy as np
import jax
import jax.numpy as jnp
from jax.experimental import pallas as pl
from jax.experimental.pallas import tpu as pltpu


LAYER_DIMS = [75, 16, 32, 64]
HIDDEN_DIM = 128
OUTPUT_NEURONS = 1
BN_EPS = 1e-5


def _round_up(x, m):
    return (x + m - 1) // m * m


def _plan(T, n_layers):
    """Static per-layer geometry (lengths + which layers use the padded conv)."""
    plan = []
    L = T
    for _ in range(n_layers):
        pad = L < 3                    # torch: switch to the padding=1 conv variant
        Lpad = L + 2 if pad else L     # per-batch row count fed to the conv
        Lc = Lpad - 2                  # conv output length (k=3, stride=1, valid)
        Lp = Lc // 2                   # maxpool(k=2, s=2) output length
        plan.append(dict(pad=pad, L=L, Lpad=Lpad, Lc=Lc, Lp=Lp))
        L = Lp
    return plan, L                     # L == RNN sequence length


def _pool_select_mats(B, Lpad, Lp, n_conv_rows):
    """Constant 0/1 matrices selecting the even/odd pooled rows per batch.

    They simultaneously (a) drop the invalid conv rows that straddle batch
    boundaries in the flattened layout and (b) implement MaxPool1d's pairing,
    so the pool result never touches VMEM scratch."""
    Se = np.zeros((B * Lp, n_conv_rows), np.float32)
    So = np.zeros_like(Se)
    for b in range(B):
        for p in range(Lp):
            Se[b * Lp + p, b * Lpad + 2 * p] = 1.0
            So[b * Lp + p, b * Lpad + 2 * p + 1] = 1.0
    return jnp.asarray(Se), jnp.asarray(So)


def _time_select_mat(B, Lseq):
    """Permutation taking batch-major rows (b*Lseq+t) to time-major rows (t*B+b)."""
    P = np.zeros((Lseq * B, B * Lseq), np.float32)
    for t in range(Lseq):
        for b in range(B):
            P[t * B + b, b * Lseq + t] = 1.0
    return jnp.asarray(P)


def make_fused_kernel(B, T, layer_dims, eps=BN_EPS):
    n_layers = len(layer_dims) - 1
    plan, Lseq = _plan(T, n_layers)
    n_inputs = 1 + 6 * n_layers + 6    # x, per-layer [wpk,b,gamma,beta,Se,So], tsel + rnn/fc

    def kernel(*refs):
        ins = refs[:n_inputs]
        o_ref = refs[n_inputs]
        scratch = list(refs[n_inputs + 1:])

        x_ref = ins[0]
        (tsel_ref, w_ih_ref, w_hh_ref, b_rnn_ref,
         w_fc_ref, b_fc_ref) = ins[1 + 6 * n_layers:]

        a = x_ref[...]                                  # (B*T, C0), batch-major rows
        si = 0
        for i in range(n_layers):
            p = plan[i]
            cin, cout = layer_dims[i], layer_dims[i + 1]
            slot = _round_up(cin, 128)                  # lane-128-aligned tap slot
            base = 1 + 6 * i
            wpk_ref, b_ref, g_ref, beta_ref, se_ref, so_ref = ins[base:base + 6]

            if p["pad"]:
                # 'conv{i}pad' variant: insert one zero row before/after each batch.
                apad_ref = scratch[si]; si += 1         # (B*(L+2), cin)
                apad_ref[...] = jnp.zeros(apad_ref.shape, jnp.float32)
                L, Lpad = p["L"], p["Lpad"]
                for b in range(B):                      # B wide stores (tiny)
                    apad_ref[b * Lpad + 1:b * Lpad + 1 + L, :] = a[b * L:(b + 1) * L, :]
                a = apad_ref[...]

            N = B * p["Lpad"]
            M = N - 2                                   # conv rows (incl. boundary junk)

            # --- im2col: 3 wide stores into lane-aligned slots, then ONE matmul ---
            patch_ref = scratch[si]; si += 1            # (M, 3*slot)
            patch_ref[...] = jnp.zeros(patch_ref.shape, jnp.float32)
            for k in range(3):
                patch_ref[:, k * slot:k * slot + cin] = a[k:k + M, :]
            conv = jnp.dot(patch_ref[...], wpk_ref[...],
                           preferred_element_type=jnp.float32) + b_ref[...]   # (M, cout)

            # --- MaxPool1d(k=2, s=2): register-resident, via selection matmuls ---
            pooled = jnp.maximum(
                jnp.dot(se_ref[...], conv, preferred_element_type=jnp.float32),
                jnp.dot(so_ref[...], conv, preferred_element_type=jnp.float32))  # (B*Lp, cout)

            act = jnp.maximum(pooled, 0.0)              # ReLU

            # --- BatchNorm1d, training mode (biased stats over batch*length) ---
            n = float(B * p["Lp"])
            mean = jnp.sum(act, axis=0, keepdims=True) / n
            diff = act - mean
            var = jnp.sum(diff * diff, axis=0, keepdims=True) / n
            a = diff * jax.lax.rsqrt(var + eps) * g_ref[...] + beta_ref[...]   # (B*Lp, cout)

        # --- RNN (tanh, batch_first, h0 = 0) ---
        # Input projection hoisted out of the recurrence; b_ih + b_hh pre-summed.
        xproj = jnp.dot(a, w_ih_ref[...],
                        preferred_element_type=jnp.float32) + b_rnn_ref[...]   # (B*Lseq, H)
        if Lseq == 1:
            xproj_tm = xproj                            # already one row per batch
        else:
            xproj_tm = jnp.dot(tsel_ref[...], xproj,
                               preferred_element_type=jnp.float32)             # time-major
        h = jnp.tanh(xproj_tm[0:B, :])                  # t = 0 (h0 == 0)
        for t in range(1, Lseq):
            h = jnp.tanh(xproj_tm[t * B:(t + 1) * B, :]
                         + jnp.dot(h, w_hh_ref[...],
                                   preferred_element_type=jnp.float32))

        # --- FC (last timestep) + Sigmoid (output_neurons == 1) ---
        logits = jnp.dot(h, w_fc_ref[...],
                         preferred_element_type=jnp.float32) + b_fc_ref[...]   # (B, 1)
        o_ref[...] = jax.nn.sigmoid(logits)

    return kernel, plan, Lseq


# ---------------------------------------------------------------------------
# Parameters (deterministic, PyTorch-style init bounds)
# ---------------------------------------------------------------------------
def init_params(key):
    keys = iter(jax.random.split(key, 16))
    conv = []
    for i in range(len(LAYER_DIMS) - 1):
        cin, cout = LAYER_DIMS[i], LAYER_DIMS[i + 1]
        bound = 1.0 / math.sqrt(cin * 3)
        w = jax.random.uniform(next(keys), (3, cin, cout), jnp.float32, -bound, bound)
        b = jax.random.uniform(next(keys), (1, cout), jnp.float32, -bound, bound)
        gamma = jnp.ones((1, cout), jnp.float32)        # BatchNorm default init
        beta = jnp.zeros((1, cout), jnp.float32)
        conv.append((w, b, gamma, beta))
    bh = 1.0 / math.sqrt(HIDDEN_DIM)
    w_ih = jax.random.uniform(next(keys), (LAYER_DIMS[-1], HIDDEN_DIM), jnp.float32, -bh, bh)
    w_hh = jax.random.uniform(next(keys), (HIDDEN_DIM, HIDDEN_DIM), jnp.float32, -bh, bh)
    b_ih = jax.random.uniform(next(keys), (1, HIDDEN_DIM), jnp.float32, -bh, bh)
    b_hh = jax.random.uniform(next(keys), (1, HIDDEN_DIM), jnp.float32, -bh, bh)
    w_fc = jax.random.uniform(next(keys), (HIDDEN_DIM, OUTPUT_NEURONS), jnp.float32, -bh, bh)
    b_fc = jax.random.uniform(next(keys), (1, OUTPUT_NEURONS), jnp.float32, -bh, bh)
    return {"conv": conv, "rnn": (w_ih, w_hh, b_ih, b_hh), "fc": (w_fc, b_fc)}


# ---------------------------------------------------------------------------
# Forward pass: host-side weight packing + ONE fused pallas_call
# ---------------------------------------------------------------------------
def conv1d_network_forward(x, params):
    B, T, C0 = x.shape
    n_layers = len(LAYER_DIMS) - 1
    kernel, plan, Lseq = make_fused_kernel(B, T, LAYER_DIMS)

    inputs = [x.astype(jnp.float32).reshape(B * T, C0)]
    scratches = []
    for i, (w, bias, gamma, beta) in enumerate(params["conv"]):
        p = plan[i]
        cin, cout = LAYER_DIMS[i], LAYER_DIMS[i + 1]
        slot = _round_up(cin, 128)
        # Pack (3, cin, cout) torch-transposed taps into (3*slot, cout) with zero
        # rows in the lane-padding -- the padded patch columns are annihilated.
        wpk = jnp.zeros((3 * slot, cout), jnp.float32)
        for k in range(3):
            wpk = wpk.at[k * slot:k * slot + cin, :].set(w[k])
        N = B * p["Lpad"]
        Se, So = _pool_select_mats(B, p["Lpad"], p["Lp"], N - 2)
        inputs += [wpk, bias, gamma, beta, Se, So]
        if p["pad"]:
            scratches.append(pltpu.VMEM((N, cin), jnp.float32))          # padded activation
        scratches.append(pltpu.VMEM((N - 2, 3 * slot), jnp.float32))     # im2col patches

    w_ih, w_hh, b_ih, b_hh = params["rnn"]
    w_fc, b_fc = params["fc"]
    inputs += [_time_select_mat(B, Lseq), w_ih, w_hh, b_ih + b_hh, w_fc, b_fc]

    out = pl.pallas_call(
        kernel,
        out_shape=jax.ShapeDtypeStruct((B, OUTPUT_NEURONS), jnp.float32),
        in_specs=[pl.BlockSpec(memory_space=pltpu.MemorySpace.VMEM)] * len(inputs),
        out_specs=pl.BlockSpec(memory_space=pltpu.MemorySpace.VMEM),
        scratch_shapes=scratches,
    )(*inputs)
    return out                                           # (B, 1), sigmoid probabilities


if __name__ == "__main__":
    key = jax.random.PRNGKey(0)
    kx, kp = jax.random.split(key)
    # consistent with the module: batch=2, seq_len=16, in_channels=75
    x = jax.random.normal(kx, (2, 16, 75), jnp.float32)
    params = init_params(kp)

    out = conv1d_network_forward(x, params)
    out = jax.block_until_ready(out)
    assert out.shape == (2, 1)
    assert bool(jnp.all(jnp.isfinite(out)))
    assert bool(jnp.all((out >= 0.0) & (out <= 1.0)))
    print("KERNEL_OK")
</pallas_src>

<mosaic_0001>
module attributes {stable_mosaic.version = 11 : i64} {
  func.func @kernel(%arg0: memref<32x75xf32, #tpu.memory_space<vmem>>, %arg1: memref<384x16xf32, #tpu.memory_space<vmem>>, %arg2: memref<1x16xf32, #tpu.memory_space<vmem>>, %arg3: memref<1x16xf32, #tpu.memory_space<vmem>>, %arg4: memref<1x16xf32, #tpu.memory_space<vmem>>, %arg5: memref<14x30xf32, #tpu.memory_space<vmem>>, %arg6: memref<14x30xf32, #tpu.memory_space<vmem>>, %arg7: memref<384x32xf32, #tpu.memory_space<vmem>>, %arg8: memref<1x32xf32, #tpu.memory_space<vmem>>, %arg9: memref<1x32xf32, #tpu.memory_space<vmem>>, %arg10: memref<1x32xf32, #tpu.memory_space<vmem>>, %arg11: memref<4x12xf32, #tpu.memory_space<vmem>>, %arg12: memref<4x12xf32, #tpu.memory_space<vmem>>, %arg13: memref<384x64xf32, #tpu.memory_space<vmem>>, %arg14: memref<1x64xf32, #tpu.memory_space<vmem>>, %arg15: memref<1x64xf32, #tpu.memory_space<vmem>>, %arg16: memref<1x64xf32, #tpu.memory_space<vmem>>, %arg17: memref<2x6xf32, #tpu.memory_space<vmem>>, %arg18: memref<2x6xf32, #tpu.memory_space<vmem>>, %arg19: memref<2x2xf32, #tpu.memory_space<vmem>>, %arg20: memref<64x128xf32, #tpu.memory_space<vmem>>, %arg21: memref<128x128xf32, #tpu.memory_space<vmem>>, %arg22: memref<1x128xf32, #tpu.memory_space<vmem>>, %arg23: memref<128x1xf32, #tpu.memory_space<vmem>>, %arg24: memref<1x1xf32, #tpu.memory_space<vmem>>, %arg25: memref<2x1xf32, #tpu.memory_space<vmem>>, %arg26: memref<30x384xf32, #tpu.memory_space<vmem>>, %arg27: memref<12x384xf32, #tpu.memory_space<vmem>>, %arg28: memref<8x32xf32, #tpu.memory_space<vmem>>, %arg29: memref<6x384xf32, #tpu.memory_space<vmem>>) attributes {dimension_semantics = [], scalar_prefetch = 0 : i64, scratch_operands = 4 : i64, tpu.core_type = #tpu.core_type<tc>} {
    %c0 = arith.constant 0 : index
    %c0_0 = arith.constant 0 : index
    %0 = vector.load %arg0[%c0, %c0_0] : memref<32x75xf32, #tpu.memory_space<vmem>>, vector<32x75xf32>
    %cst = arith.constant 0.000000e+00 : f32
    %1 = vector.broadcast %cst : f32 to vector<30x384xf32>
    %c0_1 = arith.constant 0 : index
    %c0_2 = arith.constant 0 : index
    %2 = vector.load %arg26[%c0_1, %c0_2] : memref<30x384xf32, #tpu.memory_space<vmem>>, vector<30x384xf32>
    tpu.vector_store %arg26[%c0_1, %c0_2], %1 {strides = array<i32>} : memref<30x384xf32, #tpu.memory_space<vmem>>, vector<30x384xf32>,
    %3 = vector.extract_strided_slice %0 {offsets = [0, 0], sizes = [30, 75], strides = [1, 1]} : vector<32x75xf32> to vector<30x75xf32>
    %c0_3 = arith.constant 0 : index
    %c0_4 = arith.constant 0 : index
    %4 = vector.load %arg26[%c0_3, %c0_4] : memref<30x384xf32, #tpu.memory_space<vmem>>, vector<30x75xf32>
    tpu.vector_store %arg26[%c0_3, %c0_4], %3 {strides = array<i32>} : memref<30x384xf32, #tpu.memory_space<vmem>>, vector<30x75xf32>,
    %5 = vector.extract_strided_slice %0 {offsets = [1, 0], sizes = [30, 75], strides = [1, 1]} : vector<32x75xf32> to vector<30x75xf32>
    %c0_5 = arith.constant 0 : index
    %c128 = arith.constant 128 : index
    %6 = vector.load %arg26[%c0_5, %c128] : memref<30x384xf32, #tpu.memory_space<vmem>>, vector<30x75xf32>
    tpu.vector_store %arg26[%c0_5, %c128], %5 {strides = array<i32>} : memref<30x384xf32, #tpu.memory_space<vmem>>, vector<30x75xf32>,
    %7 = vector.extract_strided_slice %0 {offsets = [2, 0], sizes = [30, 75], strides = [1, 1]} : vector<32x75xf32> to vector<30x75xf32>
    %c0_6 = arith.constant 0 : index
    %c256 = arith.constant 256 : index
    %8 = vector.load %arg26[%c0_6, %c256] : memref<30x384xf32, #tpu.memory_space<vmem>>, vector<30x75xf32>
    tpu.vector_store %arg26[%c0_6, %c256], %7 {strides = array<i32>} : memref<30x384xf32, #tpu.memory_space<vmem>>, vector<30x75xf32>,
    %c0_7 = arith.constant 0 : index
    %c0_8 = arith.constant 0 : index
    %9 = vector.load %arg26[%c0_7, %c0_8] : memref<30x384xf32, #tpu.memory_space<vmem>>, vector<30x384xf32>
    %c0_9 = arith.constant 0 : index
    %c0_10 = arith.constant 0 : index
    %10 = vector.load %arg1[%c0_9, %c0_10] : memref<384x16xf32, #tpu.memory_space<vmem>>, vector<384x16xf32>
    %cst_11 = arith.constant dense<0.000000e+00> : vector<30x16xf32>
    %11 = tpu.matmul %9, %10, %cst_11 {dimension_numbers = #tpu.dot_dimension_numbers<[1], [0], [0], [1], [0, 0, 1, 1], [], []>} : vector<30x384xf32>, vector<384x16xf32>, vector<30x16xf32> -> vector<30x16xf32>
    %c0_12 = arith.constant 0 : index
    %c0_13 = arith.constant 0 : index
    %12 = vector.load %arg2[%c0_12, %c0_13] : memref<1x16xf32, #tpu.memory_space<vmem>>, vector<1x16xf32>
    %13 = vector.broadcast %12 : vector<1x16xf32> to vector<30x16xf32>
    %14 = arith.addf %11, %13 : vector<30x16xf32>
    %c0_14 = arith.constant 0 : index
    %c0_15 = arith.constant 0 : index
    %15 = vector.load %arg5[%c0_14, %c0_15] : memref<14x30xf32, #tpu.memory_space<vmem>>, vector<14x30xf32>
    %cst_16 = arith.constant dense<0.000000e+00> : vector<14x16xf32>
    %16 = tpu.matmul %15, %14, %cst_16 {dimension_numbers = #tpu.dot_dimension_numbers<[1], [0], [0], [1], [0, 0, 1, 1], [], []>} : vector<14x30xf32>, vector<30x16xf32>, vector<14x16xf32> -> vector<14x16xf32>
    %c0_17 = arith.constant 0 : index
    %c0_18 = arith.constant 0 : index
    %17 = vector.load %arg6[%c0_17, %c0_18] : memref<14x30xf32, #tpu.memory_space<vmem>>, vector<14x30xf32>
    %cst_19 = arith.constant dense<0.000000e+00> : vector<14x16xf32>
    %18 = tpu.matmul %17, %14, %cst_19 {dimension_numbers = #tpu.dot_dimension_numbers<[1], [0], [0], [1], [0, 0, 1, 1], [], []>} : vector<14x30xf32>, vector<30x16xf32>, vector<14x16xf32> -> vector<14x16xf32>
    %19 = arith.maximumf %16, %18 : vector<14x16xf32>
    %cst_20 = arith.constant 0.000000e+00 : f32
    %20 = vector.broadcast %cst_20 : f32 to vector<14x16xf32>
    %21 = arith.maximumf %19, %20 : vector<14x16xf32>
    %cst_21 = arith.constant dense<0.000000e+00> : vector<16xf32>
    %22 = vector.multi_reduction <add>, %21, %cst_21 [0] : vector<14x16xf32> to vector<16xf32>
    %23 = vector.shape_cast %22 : vector<16xf32> to vector<1x16xf32>
    %cst_22 = arith.constant 1.400000e+01 : f32
    %24 = vector.broadcast %cst_22 : f32 to vector<1x16xf32>
    %25 = arith.divf %23, %24 : vector<1x16xf32>
    %26 = vector.broadcast %25 : vector<1x16xf32> to vector<14x16xf32>
    %27 = arith.subf %21, %26 : vector<14x16xf32>
    %28 = arith.mulf %27, %27 : vector<14x16xf32>
    %cst_23 = arith.constant dense<0.000000e+00> : vector<16xf32>
    %29 = vector.multi_reduction <add>, %28, %cst_23 [0] : vector<14x16xf32> to vector<16xf32>
    %30 = vector.shape_cast %29 : vector<16xf32> to vector<1x16xf32>
    %cst_24 = arith.constant 1.400000e+01 : f32
    %31 = vector.broadcast %cst_24 : f32 to vector<1x16xf32>
    %32 = arith.divf %30, %31 : vector<1x16xf32>
    %cst_25 = arith.constant 9.99999974E-6 : f32
    %33 = vector.broadcast %cst_25 : f32 to vector<1x16xf32>
    %34 = arith.addf %32, %33 : vector<1x16xf32>
    %35 = math.rsqrt %34 : vector<1x16xf32>
    %36 = vector.broadcast %35 : vector<1x16xf32> to vector<14x16xf32>
    %37 = arith.mulf %27, %36 : vector<14x16xf32>
    %c0_26 = arith.constant 0 : index
    %c0_27 = arith.constant 0 : index
    %38 = vector.load %arg3[%c0_26, %c0_27] : memref<1x16xf32, #tpu.memory_space<vmem>>, vector<1x16xf32>
    %39 = vector.broadcast %38 : vector<1x16xf32> to vector<14x16xf32>
    %40 = arith.mulf %37, %39 : vector<14x16xf32>
    %c0_28 = arith.constant 0 : index
    %c0_29 = arith.constant 0 : index
    %41 = vector.load %arg4[%c0_28, %c0_29] : memref<1x16xf32, #tpu.memory_space<vmem>>, vector<1x16xf32>
    %42 = vector.broadcast %41 : vector<1x16xf32> to vector<14x16xf32>
    %43 = arith.addf %40, %42 : vector<14x16xf32>
    %cst_30 = arith.constant 0.000000e+00 : f32
    %44 = vector.broadcast %cst_30 : f32 to vector<12x384xf32>
    %c0_31 = arith.constant 0 : index
    %c0_32 = arith.constant 0 : index
    %45 = vector.load %arg27[%c0_31, %c0_32] : memref<12x384xf32, #tpu.memory_space<vmem>>, vector<12x384xf32>
    tpu.vector_store %arg27[%c0_31, %c0_32], %44 {strides = array<i32>} : memref<12x384xf32, #tpu.memory_space<vmem>>, vector<12x384xf32>,
    %46 = vector.extract_strided_slice %43 {offsets = [0, 0], sizes = [12, 16], strides = [1, 1]} : vector<14x16xf32> to vector<12x16xf32>
    %c0_33 = arith.constant 0 : index
    %c0_34 = arith.constant 0 : index
    %47 = vector.load %arg27[%c0_33, %c0_34] : memref<12x384xf32, #tpu.memory_space<vmem>>, vector<12x16xf32>
    tpu.vector_store %arg27[%c0_33, %c0_34], %46 {strides = array<i32>} : memref<12x384xf32, #tpu.memory_space<vmem>>, vector<12x16xf32>,
    %48 = vector.extract_strided_slice %43 {offsets = [1, 0], sizes = [12, 16], strides = [1, 1]} : vector<14x16xf32> to vector<12x16xf32>
    %c0_35 = arith.constant 0 : index
    %c128_36 = arith.constant 128 : index
    %49 = vector.load %arg27[%c0_35, %c128_36] : memref<12x384xf32, #tpu.memory_space<vmem>>, vector<12x16xf32>
    tpu.vector_store %arg27[%c0_35, %c128_36], %48 {strides = array<i32>} : memref<12x384xf32, #tpu.memory_space<vmem>>, vector<12x16xf32>,
    %50 = vector.extract_strided_slice %43 {offsets = [2, 0], sizes = [12, 16], strides = [1, 1]} : vector<14x16xf32> to vector<12x16xf32>
    %c0_37 = arith.constant 0 : index
    %c256_38 = arith.constant 256 : index
    %51 = vector.load %arg27[%c0_37, %c256_38] : memref<12x384xf32, #tpu.memory_space<vmem>>, vector<12x16xf32>
    tpu.vector_store %arg27[%c0_37, %c256_38], %50 {strides = array<i32>} : memref<12x384xf32, #tpu.memory_space<vmem>>, vector<12x16xf32>,
    %c0_39 = arith.constant 0 : index
    %c0_40 = arith.constant 0 : index
    %52 = vector.load %arg27[%c0_39, %c0_40] : memref<12x384xf32, #tpu.memory_space<vmem>>, vector<12x384xf32>
    %c0_41 = arith.constant 0 : index
    %c0_42 = arith.constant 0 : index
    %53 = vector.load %arg7[%c0_41, %c0_42] : memref<384x32xf32, #tpu.memory_space<vmem>>, vector<384x32xf32>
    %cst_43 = arith.constant dense<0.000000e+00> : vector<12x32xf32>
    %54 = tpu.matmul %52, %53, %cst_43 {dimension_numbers = #tpu.dot_dimension_numbers<[1], [0], [0], [1], [0, 0, 1, 1], [], []>} : vector<12x384xf32>, vector<384x32xf32>, vector<12x32xf32> -> vector<12x32xf32>
    %c0_44 = arith.constant 0 : index
    %c0_45 = arith.constant 0 : index
    %55 = vector.load %arg8[%c0_44, %c0_45] : memref<1x32xf32, #tpu.memory_space<vmem>>, vector<1x32xf32>
    %56 = vector.broadcast %55 : vector<1x32xf32> to vector<12x32xf32>
    %57 = arith.addf %54, %56 : vector<12x32xf32>
    %c0_46 = arith.constant 0 : index
    %c0_47 = arith.constant 0 : index
    %58 = vector.load %arg11[%c0_46, %c0_47] : memref<4x12xf32, #tpu.memory_space<vmem>>, vector<4x12xf32>
    %cst_48 = arith.constant dense<0.000000e+00> : vector<4x32xf32>
    %59 = tpu.matmul %58, %57, %cst_48 {dimension_numbers = #tpu.dot_dimension_numbers<[1], [0], [0], [1], [0, 0, 1, 1], [], []>} : vector<4x12xf32>, vector<12x32xf32>, vector<4x32xf32> -> vector<4x32xf32>
    %c0_49 = arith.constant 0 : index
    %c0_50 = arith.constant 0 : index
    %60 = vector.load %arg12[%c0_49, %c0_50] : memref<4x12xf32, #tpu.memory_space<vmem>>, vector<4x12xf32>
    %cst_51 = arith.constant dense<0.000000e+00> : vector<4x32xf32>
    %61 = tpu.matmul %60, %57, %cst_51 {dimension_numbers = #tpu.dot_dimension_numbers<[1], [0], [0], [1], [0, 0, 1, 1], [], []>} : vector<4x12xf32>, vector<12x32xf32>, vector<4x32xf32> -> vector<4x32xf32>
    %62 = arith.maximumf %59, %61 : vector<4x32xf32>
    %cst_52 = arith.constant 0.000000e+00 : f32
    %63 = vector.broadcast %cst_52 : f32 to vector<4x32xf32>
    %64 = arith.maximumf %62, %63 : vector<4x32xf32>
    %cst_53 = arith.constant dense<0.000000e+00> : vector<32xf32>
    %65 = vector.multi_reduction <add>, %64, %cst_53 [0] : vector<4x32xf32> to vector<32xf32>
    %66 = vector.shape_cast %65 : vector<32xf32> to vector<1x32xf32>
    %cst_54 = arith.constant 4.000000e+00 : f32
    %67 = vector.broadcast %cst_54 : f32 to vector<1x32xf32>
    %68 = arith.divf %66, %67 : vector<1x32xf32>
    %69 = vector.broadcast %68 : vector<1x32xf32> to vector<4x32xf32>
    %70 = arith.subf %64, %69 : vector<4x32xf32>
    %71 = arith.mulf %70, %70 : vector<4x32xf32>
    %cst_55 = arith.constant dense<0.000000e+00> : vector<32xf32>
    %72 = vector.multi_reduction <add>, %71, %cst_55 [0] : vector<4x32xf32> to vector<32xf32>
    %73 = vector.shape_cast %72 : vector<32xf32> to vector<1x32xf32>
    %cst_56 = arith.constant 4.000000e+00 : f32
    %74 = vector.broadcast %cst_56 : f32 to vector<1x32xf32>
    %75 = arith.divf %73, %74 : vector<1x32xf32>
    %cst_57 = arith.constant 9.99999974E-6 : f32
    %76 = vector.broadcast %cst_57 : f32 to vector<1x32xf32>
    %77 = arith.addf %75, %76 : vector<1x32xf32>
    %78 = math.rsqrt %77 : vector<1x32xf32>
    %79 = vector.broadcast %78 : vector<1x32xf32> to vector<4x32xf32>
    %80 = arith.mulf %70, %79 : vector<4x32xf32>
    %c0_58 = arith.constant 0 : index
    %c0_59 = arith.constant 0 : index
    %81 = vector.load %arg9[%c0_58, %c0_59] : memref<1x32xf32, #tpu.memory_space<vmem>>, vector<1x32xf32>
    %82 = vector.broadcast %81 : vector<1x32xf32> to vector<4x32xf32>
    %83 = arith.mulf %80, %82 : vector<4x32xf32>
    %c0_60 = arith.constant 0 : index
    %c0_61 = arith.constant 0 : index
    %84 = vector.load %arg10[%c0_60, %c0_61] : memref<1x32xf32, #tpu.memory_space<vmem>>, vector<1x32xf32>
    %85 = vector.broadcast %84 : vector<1x32xf32> to vector<4x32xf32>
    %86 = arith.addf %83, %85 : vector<4x32xf32>
    %cst_62 = arith.constant 0.000000e+00 : f32
    %87 = vector.broadcast %cst_62 : f32 to vector<8x32xf32>
    %c0_63 = arith.constant 0 : index
    %c0_64 = arith.constant 0 : index
    %88 = vector.load %arg28[%c0_63, %c0_64] : memref<8x32xf32, #tpu.memory_space<vmem>>, vector<8x32xf32>
    tpu.vector_store %arg28[%c0_63, %c0_64], %87 {strides = array<i32>} : memref<8x32xf32, #tpu.memory_space<vmem>>, vector<8x32xf32>,
    %89 = vector.extract_strided_slice %86 {offsets = [0, 0], sizes = [2, 32], strides = [1, 1]} : vector<4x32xf32> to vector<2x32xf32>
    %c1 = arith.constant 1 : index
    %c0_65 = arith.constant 0 : index
    %90 = vector.load %arg28[%c1, %c0_65] : memref<8x32xf32, #tpu.memory_space<vmem>>, vector<2x32xf32>
    tpu.vector_store %arg28[%c1, %c0_65], %89 {strides = array<i32>} : memref<8x32xf32, #tpu.memory_space<vmem>>, vector<2x32xf32>,
    %91 = vector.extract_strided_slice %86 {offsets = [2, 0], sizes = [2, 32], strides = [1, 1]} : vector<4x32xf32> to vector<2x32xf32>
    %c5 = arith.constant 5 : index
    %c0_66 = arith.constant 0 : index
    %92 = vector.load %arg28[%c5, %c0_66] : memref<8x32xf32, #tpu.memory_space<vmem>>, vector<2x32xf32>
    tpu.vector_store %arg28[%c5, %c0_66], %91 {strides = array<i32>} : memref<8x32xf32, #tpu.memory_space<vmem>>, vector<2x32xf32>,
    %c0_67 = arith.constant 0 : index
    %c0_68 = arith.constant 0 : index
    %93 = vector.load %arg28[%c0_67, %c0_68] : memref<8x32xf32, #tpu.memory_space<vmem>>, vector<8x32xf32>
    %cst_69 = arith.constant 0.000000e+00 : f32
    %94 = vector.broadcast %cst_69 : f32 to vector<6x384xf32>
    %c0_70 = arith.constant 0 : index
    %c0_71 = arith.constant 0 : index
    %95 = vector.load %arg29[%c0_70, %c0_71] : memref<6x384xf32, #tpu.memory_space<vmem>>, vector<6x384xf32>
    tpu.vector_store %arg29[%c0_70, %c0_71], %94 {strides = array<i32>} : memref<6x384xf32, #tpu.memory_space<vmem>>, vector<6x384xf32>,
    %96 = vector.extract_strided_slice %93 {offsets = [0, 0], sizes = [6, 32], strides = [1, 1]} : vector<8x32xf32> to vector<6x32xf32>
    %c0_72 = arith.constant 0 : index
    %c0_73 = arith.constant 0 : index
    %97 = vector.load %arg29[%c0_72, %c0_73] : memref<6x384xf32, #tpu.memory_space<vmem>>, vector<6x32xf32>
    tpu.vector_store %arg29[%c0_72, %c0_73], %96 {strides = array<i32>} : memref<6x384xf32, #tpu.memory_space<vmem>>, vector<6x32xf32>,
    %98 = vector.extract_strided_slice %93 {offsets = [1, 0], sizes = [6, 32], strides = [1, 1]} : vector<8x32xf32> to vector<6x32xf32>
    %c0_74 = arith.constant 0 : index
    %c128_75 = arith.constant 128 : index
    %99 = vector.load %arg29[%c0_74, %c128_75] : memref<6x384xf32, #tpu.memory_space<vmem>>, vector<6x32xf32>
    tpu.vector_store %arg29[%c0_74, %c128_75], %98 {strides = array<i32>} : memref<6x384xf32, #tpu.memory_space<vmem>>, vector<6x32xf32>,
    %100 = vector.extract_strided_slice %93 {offsets = [2, 0], sizes = [6, 32], strides = [1, 1]} : vector<8x32xf32> to vector<6x32xf32>
    %c0_76 = arith.constant 0 : index
    %c256_77 = arith.constant 256 : index
    %101 = vector.load %arg29[%c0_76, %c256_77] : memref<6x384xf32, #tpu.memory_space<vmem>>, vector<6x32xf32>
    tpu.vector_store %arg29[%c0_76, %c256_77], %100 {strides = array<i32>} : memref<6x384xf32, #tpu.memory_space<vmem>>, vector<6x32xf32>,
    %c0_78 = arith.constant 0 : index
    %c0_79 = arith.constant 0 : index
    %102 = vector.load %arg29[%c0_78, %c0_79] : memref<6x384xf32, #tpu.memory_space<vmem>>, vector<6x384xf32>
    %c0_80 = arith.constant 0 : index
    %c0_81 = arith.constant 0 : index
    %103 = vector.load %arg13[%c0_80, %c0_81] : memref<384x64xf32, #tpu.memory_space<vmem>>, vector<384x64xf32>
    %cst_82 = arith.constant dense<0.000000e+00> : vector<6x64xf32>
    %104 = tpu.matmul %102, %103, %cst_82 {dimension_numbers = #tpu.dot_dimension_numbers<[1], [0], [0], [1], [0, 0, 1, 1], [], []>} : vector<6x384xf32>, vector<384x64xf32>, vector<6x64xf32> -> vector<6x64xf32>
    %c0_83 = arith.constant 0 : index
    %c0_84 = arith.constant 0 : index
    %105 = vector.load %arg14[%c0_83, %c0_84] : memref<1x64xf32, #tpu.memory_space<vmem>>, vector<1x64xf32>
    %106 = vector.broadcast %105 : vector<1x64xf32> to vector<6x64xf32>
    %107 = arith.addf %104, %106 : vector<6x64xf32>
    %c0_85 = arith.constant 0 : index
    %c0_86 = arith.constant 0 : index
    %108 = vector.load %arg17[%c0_85, %c0_86] : memref<2x6xf32, #tpu.memory_space<vmem>>, vector<2x6xf32>
    %cst_87 = arith.constant dense<0.000000e+00> : vector<2x64xf32>
    %109 = tpu.matmul %108, %107, %cst_87 {dimension_numbers = #tpu.dot_dimension_numbers<[1], [0], [0], [1], [0, 0, 1, 1], [], []>} : vector<2x6xf32>, vector<6x64xf32>, vector<2x64xf32> -> vector<2x64xf32>
    %c0_88 = arith.constant 0 : index
    %c0_89 = arith.constant 0 : index
    %110 = vector.load %arg18[%c0_88, %c0_89] : memref<2x6xf32, #tpu.memory_space<vmem>>, vector<2x6xf32>
    %cst_90 = arith.constant dense<0.000000e+00> : vector<2x64xf32>
    %111 = tpu.matmul %110, %107, %cst_90 {dimension_numbers = #tpu.dot_dimension_numbers<[1], [0], [0], [1], [0, 0, 1, 1], [], []>} : vector<2x6xf32>, vector<6x64xf32>, vector<2x64xf32> -> vector<2x64xf32>
    %112 = arith.maximumf %109, %111 : vector<2x64xf32>
    %cst_91 = arith.constant 0.000000e+00 : f32
    %113 = vector.broadcast %cst_91 : f32 to vector<2x64xf32>
    %114 = arith.maximumf %112, %113 : vector<2x64xf32>
    %cst_92 = arith.constant dense<0.000000e+00> : vector<64xf32>
    %115 = vector.multi_reduction <add>, %114, %cst_92 [0] : vector<2x64xf32> to vector<64xf32>
    %116 = vector.shape_cast %115 : vector<64xf32> to vector<1x64xf32>
    %cst_93 = arith.constant 2.000000e+00 : f32
    %117 = vector.broadcast %cst_93 : f32 to vector<1x64xf32>
    %118 = arith.divf %116, %117 : vector<1x64xf32>
    %119 = vector.broadcast %118 : vector<1x64xf32> to vector<2x64xf32>
    %120 = arith.subf %114, %119 : vector<2x64xf32>
    %121 = arith.mulf %120, %120 : vector<2x64xf32>
    %cst_94 = arith.constant dense<0.000000e+00> : vector<64xf32>
    %122 = vector.multi_reduction <add>, %121, %cst_94 [0] : vector<2x64xf32> to vector<64xf32>
    %123 = vector.shape_cast %122 : vector<64xf32> to vector<1x64xf32>
    %cst_95 = arith.constant 2.000000e+00 : f32
    %124 = vector.broadcast %cst_95 : f32 to vector<1x64xf32>
    %125 = arith.divf %123, %124 : vector<1x64xf32>
    %cst_96 = arith.constant 9.99999974E-6 : f32
    %126 = vector.broadcast %cst_96 : f32 to vector<1x64xf32>
    %127 = arith.addf %125, %126 : vector<1x64xf32>
    %128 = math.rsqrt %127 : vector<1x64xf32>
    %129 = vector.broadcast %128 : vector<1x64xf32> to vector<2x64xf32>
    %130 = arith.mulf %120, %129 : vector<2x64xf32>
    %c0_97 = arith.constant 0 : index
    %c0_98 = arith.constant 0 : index
    %131 = vector.load %arg15[%c0_97, %c0_98] : memref<1x64xf32, #tpu.memory_space<vmem>>, vector<1x64xf32>
    %132 = vector.broadcast %131 : vector<1x64xf32> to vector<2x64xf32>
    %133 = arith.mulf %130, %132 : vector<2x64xf32>
    %c0_99 = arith.constant 0 : index
    %c0_100 = arith.constant 0 : index
    %134 = vector.load %arg16[%c0_99, %c0_100] : memref<1x64xf32, #tpu.memory_space<vmem>>, vector<1x64xf32>
    %135 = vector.broadcast %134 : vector<1x64xf32> to vector<2x64xf32>
    %136 = arith.addf %133, %135 : vector<2x64xf32>
    %c0_101 = arith.constant 0 : index
    %c0_102 = arith.constant 0 : index
    %137 = vector.load %arg20[%c0_101, %c0_102] : memref<64x128xf32, #tpu.memory_space<vmem>>, vector<64x128xf32>
    %cst_103 = arith.constant dense<0.000000e+00> : vector<2x128xf32>
    %138 = tpu.matmul %136, %137, %cst_103 {dimension_numbers = #tpu.dot_dimension_numbers<[1], [0], [0], [1], [0, 0, 1, 1], [], []>} : vector<2x64xf32>, vector<64x128xf32>, vector<2x128xf32> -> vector<2x128xf32>
    %c0_104 = arith.constant 0 : index
    %c0_105 = arith.constant 0 : index
    %139 = vector.load %arg22[%c0_104, %c0_105] : memref<1x128xf32, #tpu.memory_space<vmem>>, vector<1x128xf32>
    %140 = vector.broadcast %139 : vector<1x128xf32> to vector<2x128xf32>
    %141 = arith.addf %138, %140 : vector<2x128xf32>
    %142 = math.tanh %141 : vector<2x128xf32>
    %c0_106 = arith.constant 0 : index
    %c0_107 = arith.constant 0 : index
    %143 = vector.load %arg23[%c0_106, %c0_107] : memref<128x1xf32, #tpu.memory_space<vmem>>, vector<128x1xf32>
    %cst_108 = arith.constant dense<0.000000e+00> : vector<2x1xf32>
    %144 = tpu.matmul %142, %143, %cst_108 {dimension_numbers = #tpu.dot_dimension_numbers<[1], [0], [0], [1], [0, 0, 1, 1], [], []>} : vector<2x128xf32>, vector<128x1xf32>, vector<2x1xf32> -> vector<2x1xf32>
    %c0_109 = arith.constant 0 : index
    %c0_110 = arith.constant 0 : index
    %145 = vector.load %arg24[%c0_109, %c0_110] : memref<1x1xf32, #tpu.memory_space<vmem>>, vector<1x1xf32>
    %146 = vector.broadcast %145 : vector<1x1xf32> to vector<2x1xf32>
    %147 = arith.addf %144, %146 : vector<2x1xf32>
    %148 = arith.negf %147 : vector<2x1xf32>
    %149 = math.exp %148 : vector<2x1xf32>
    %cst_111 = arith.constant 1.000000e+00 : f32
    %150 = vector.broadcast %cst_111 : f32 to vector<2x1xf32>
    %151 = arith.addf %150, %149 : vector<2x1xf32>
    %152 = arith.divf %150, %151 : vector<2x1xf32>
    %c0_112 = arith.constant 0 : index
    %c0_113 = arith.constant 0 : index
    %153 = vector.load %arg25[%c0_112, %c0_113] : memref<2x1xf32, #tpu.memory_space<vmem>>, vector<2x1xf32>
    tpu.vector_store %arg25[%c0_112, %c0_113], %152 {strides = array<i32>} : memref<2x1xf32, #tpu.memory_space<vmem>>, vector<2x1xf32>,
    return
  }
}

</mosaic_0001>

<llo_original>
// kernel: tpu_custom_call.1
$region0: #{tpu_custom_call.1}
  #allocation0 [shape = 'u32[]', space=smem, size = 0x4, offset = 0x4, fixed_abs, tag = 'smem constant byte address 0x4 - core index']
  #allocation1 [shape = 'u32[144,128]{1,0:T(1,128)}', space=vmem, size = 0x12000, scoped, tag = 'internal scratch']
  #allocation2 [shape = 'f32[30,384]{1,0:T(8,128)}', space=vmem, size = 0xc000, scoped, tag = 'scratch operand']
  #allocation3 [shape = 'f32[12,384]{1,0:T(8,128)}', space=vmem, size = 0x6000, scoped, tag = 'scratch operand']
  #allocation4 [shape = 'f32[8,32]{1,0:T(8,128)}', space=vmem, size = 0x1000, scoped, tag = 'scratch operand']
  #allocation5 [shape = 'f32[6,384]{1,0:T(8,128)}', space=vmem, size = 0x3000, scoped, tag = 'scratch operand']
  #allocation6 [shape = 'f32[1,1]{1,0:T(1,128)S(1)}', space=vmem, size = 0x200, scoped, tag = 'scoped memory for tpu_custom_call.1']
  %s0 = inlined_call_operand.vmem [shape: f32[32,75], index: 0, kind: input, shape index: {}]
  %s1 = inlined_call_operand.vmem [shape: f32[384,16], index: 1, kind: input, shape index: {}]
  %s2 = inlined_call_operand.vmem [shape: f32[1,16], index: 2, kind: input, shape index: {}]
  %s3 = inlined_call_operand.vmem [shape: f32[1,16], index: 3, kind: input, shape index: {}]
  %s4 = inlined_call_operand.vmem [shape: f32[1,16], index: 4, kind: input, shape index: {}]
  %s5 = inlined_call_operand.vmem [shape: f32[14,30], index: 5, kind: input, shape index: {}]
  %s6 = inlined_call_operand.vmem [shape: f32[14,30], index: 6, kind: input, shape index: {}]
  %s7 = inlined_call_operand.vmem [shape: f32[384,32], index: 7, kind: input, shape index: {}]
  %s8 = inlined_call_operand.vmem [shape: f32[1,32], index: 8, kind: input, shape index: {}]
  %s9 = inlined_call_operand.vmem [shape: f32[1,32], index: 9, kind: input, shape index: {}]
  %s10 = inlined_call_operand.vmem [shape: f32[1,32], index: 10, kind: input, shape index: {}]
  %s11 = inlined_call_operand.vmem [shape: f32[4,12], index: 11, kind: input, shape index: {}]
  %s12 = inlined_call_operand.vmem [shape: f32[4,12], index: 12, kind: input, shape index: {}]
  %s13 = inlined_call_operand.vmem [shape: f32[384,64], index: 13, kind: input, shape index: {}]
  %s14 = inlined_call_operand.vmem [shape: f32[1,64], index: 14, kind: input, shape index: {}]
  %s15 = inlined_call_operand.vmem [shape: f32[1,64], index: 15, kind: input, shape index: {}]
  %s16 = inlined_call_operand.vmem [shape: f32[1,64], index: 16, kind: input, shape index: {}]
  %s17 = inlined_call_operand.vmem [shape: f32[2,6], index: 17, kind: input, shape index: {}]
  %s18 = inlined_call_operand.vmem [shape: f32[2,6], index: 18, kind: input, shape index: {}]
  %s19 = inlined_call_operand.vmem [shape: f32[2,2], index: 19, kind: input, shape index: {}]
  %s20 = inlined_call_operand.vmem [shape: f32[64,128], index: 20, kind: input, shape index: {}]
  %s21 = inlined_call_operand.vmem [shape: f32[128,128], index: 21, kind: input, shape index: {}]
  %s22 = inlined_call_operand.vmem [shape: f32[1,128], index: 22, kind: input, shape index: {}]
  %s23 = inlined_call_operand.vmem [shape: f32[128,1], index: 23, kind: input, shape index: {}]
  %s24 = inlined_call_operand.<no memory space> [shape: f32[1,1], index: 24, kind: input, shape index: {}]
  %s25 = inlined_call_operand.vmem [shape: f32[2,1], index: 25, kind: output, shape index: {}]
  %s26 = sld [smem:[#allocation0]]
  $region110: #{tpu_custom_call.1} parent=0
    _
  %s28 = ssub.s32 1, %s26
  %s29 = scalar_select 0, %s28, %s26
  %v30 = vstv %s24
  %31 = vst [vmem:[#allocation6] sm:$0x1] %v30
  // Predicated region
  $region2: #{tpu_custom_call.1} parent=0 // pred_check
    _
  $region3: #{tpu_custom_call.1} parent=0 // pred_check_branch
    %33 = sbr.rel (0) target = $region5
  $region4: #{tpu_custom_call.1} parent=0 // pred_region
    _
  $region5: #{tpu_custom_call.1} parent=0 // pred_fallthru
    _
  // Predicated region
  $region6: #{tpu_custom_call.1} parent=0 // pred_check
    _
  $region7: #{tpu_custom_call.1} parent=0 // pred_check_branch
    %35 = sbr.rel (0) target = $region9
  $region8: #{tpu_custom_call.1} parent=0 // pred_region
    _
  $region9: #{tpu_custom_call.1} parent=0 // pred_fallthru
    _
  // Predicated region
  $region10: #{tpu_custom_call.1} parent=0 // pred_check
    _
  $region11: #{tpu_custom_call.1} parent=0 // pred_check_branch
    %37 = sbr.rel (0) target = $region13
  $region12: #{tpu_custom_call.1} parent=0 // pred_region
    _
  $region13: #{tpu_custom_call.1} parent=0 // pred_fallthru
    _
  // Predicated region
  $region14: #{tpu_custom_call.1} parent=0 // pred_check
    _
  $region15: #{tpu_custom_call.1} parent=0 // pred_check_branch
    %39 = sbr.rel (0) target = $region17
  $region16: #{tpu_custom_call.1} parent=0 // pred_region
    _
  $region17: #{tpu_custom_call.1} parent=0 // pred_fallthru
    _
  // Predicated region
  $region18: #{tpu_custom_call.1} parent=0 // pred_check
    _
  $region19: #{tpu_custom_call.1} parent=0 // pred_check_branch
    %41 = sbr.rel (0) target = $region21
  $region20: #{tpu_custom_call.1} parent=0 // pred_region
    _
  $region21: #{tpu_custom_call.1} parent=0 // pred_fallthru
    _
  // Predicated region
  $region22: #{tpu_custom_call.1} parent=0 // pred_check
    _
  $region23: #{tpu_custom_call.1} parent=0 // pred_check_branch
    %43 = sbr.rel (0) target = $region25
  $region24: #{tpu_custom_call.1} parent=0 // pred_region
    _
  $region25: #{tpu_custom_call.1} parent=0 // pred_fallthru
    _
  // Predicated region
  $region26: #{tpu_custom_call.1} parent=0 // pred_check
    _
  $region27: #{tpu_custom_call.1} parent=0 // pred_check_branch
    %45 = sbr.rel (0) target = $region29
  $region28: #{tpu_custom_call.1} parent=0 // pred_region
    _
  $region29: #{tpu_custom_call.1} parent=0 // pred_fallthru
    _
  // Predicated region
  $region30: #{tpu_custom_call.1} parent=0 // pred_check
    _
  $region31: #{tpu_custom_call.1} parent=0 // pred_check_branch
    %47 = sbr.rel (0) target = $region33
  $region32: #{tpu_custom_call.1} parent=0 // pred_region
    _
  $region33: #{tpu_custom_call.1} parent=0 // pred_fallthru
    _
  // Predicated region
  $region34: #{tpu_custom_call.1} parent=0 // pred_check
    _
  $region35: #{tpu_custom_call.1} parent=0 // pred_check_branch
    %49 = sbr.rel (0) target = $region37
  $region36: #{tpu_custom_call.1} parent=0 // pred_region
    _
  $region37: #{tpu_custom_call.1} parent=0 // pred_fallthru
    _
  // Predicated region
  $region38: #{tpu_custom_call.1} parent=0 // pred_check
    _
  $region39: #{tpu_custom_call.1} parent=0 // pred_check_branch
    %51 = sbr.rel (0) target = $region41
  $region40: #{tpu_custom_call.1} parent=0 // pred_region
    _
  $region41: #{tpu_custom_call.1} parent=0 // pred_fallthru
    _
  // Predicated region
  $region42: #{tpu_custom_call.1} parent=0 // pred_check
    _
  $region43: #{tpu_custom_call.1} parent=0 // pred_check_branch
    %53 = sbr.rel (0) target = $region45
  $region44: #{tpu_custom_call.1} parent=0 // pred_region
    _
  $region45: #{tpu_custom_call.1} parent=0 // pred_fallthru
    _
  // Predicated region
  $region46: #{tpu_custom_call.1} parent=0 // pred_check
    _
  $region47: #{tpu_custom_call.1} parent=0 // pred_check_branch
    %55 = sbr.rel (0) target = $region49
  $region48: #{tpu_custom_call.1} parent=0 // pred_region
    _
  $region49: #{tpu_custom_call.1} parent=0 // pred_fallthru
    _
  // Predicated region
  $region50: #{tpu_custom_call.1} parent=0 // pred_check
    _
  $region51: #{tpu_custom_call.1} parent=0 // pred_check_branch
    %57 = sbr.rel (0) target = $region53
  $region52: #{tpu_custom_call.1} parent=0 // pred_region
    _
  $region53: #{tpu_custom_call.1} parent=0 // pred_fallthru
    _
  // Predicated region
  $region54: #{tpu_custom_call.1} parent=0 // pred_check
    _
  $region55: #{tpu_custom_call.1} parent=0 // pred_check_branch
    %59 = sbr.rel (0) target = $region57
  $region56: #{tpu_custom_call.1} parent=0 // pred_region
    _
  $region57: #{tpu_custom_call.1} parent=0 // pred_fallthru
    _
  // Predicated region
  $region58: #{tpu_custom_call.1} parent=0 // pred_check
    _
  $region59: #{tpu_custom_call.1} parent=0 // pred_check_branch
    %61 = sbr.rel (0) target = $region61
  $region60: #{tpu_custom_call.1} parent=0 // pred_region
    _
  $region61: #{tpu_custom_call.1} parent=0 // pred_fallthru
    _
  // Predicated region
  $region62: #{tpu_custom_call.1} parent=0 // pred_check
    _
  $region63: #{tpu_custom_call.1} parent=0 // pred_check_branch
    %63 = sbr.rel (0) target = $region65
  $region64: #{tpu_custom_call.1} parent=0 // pred_region
    _
  $region65: #{tpu_custom_call.1} parent=0 // pred_fallthru
    _
  // Predicated region
  $region66: #{tpu_custom_call.1} parent=0 // pred_check
    _
  $region67: #{tpu_custom_call.1} parent=0 // pred_check_branch
    %65 = sbr.rel (0) target = $region69
  $region68: #{tpu_custom_call.1} parent=0 // pred_region
    _
  $region69: #{tpu_custom_call.1} parent=0 // pred_fallthru
    _
  // Predicated region
  $region70: #{tpu_custom_call.1} parent=0 // pred_check
    _
  $region71: #{tpu_custom_call.1} parent=0 // pred_check_branch
    %67 = sbr.rel (0) target = $region73
  $region72: #{tpu_custom_call.1} parent=0 // pred_region
    _
  $region73: #{tpu_custom_call.1} parent=0 // pred_fallthru
    _
  // Predicated region
  $region74: #{tpu_custom_call.1} parent=0 // pred_check
    _
  $region75: #{tpu_custom_call.1} parent=0 // pred_check_branch
    %69 = sbr.rel (0) target = $region77
  $region76: #{tpu_custom_call.1} parent=0 // pred_region
    _
  $region77: #{tpu_custom_call.1} parent=0 // pred_fallthru
    _
  // Predicated region
  $region78: #{tpu_custom_call.1} parent=0 // pred_check
    _
  $region79: #{tpu_custom_call.1} parent=0 // pred_check_branch
    %71 = sbr.rel (0) target = $region81
  $region80: #{tpu_custom_call.1} parent=0 // pred_region
    _
  $region81: #{tpu_custom_call.1} parent=0 // pred_fallthru
    _
  // Predicated region
  $region82: #{tpu_custom_call.1} parent=0 // pred_check
    _
  $region83: #{tpu_custom_call.1} parent=0 // pred_check_branch
    %73 = sbr.rel (0) target = $region85
  $region84: #{tpu_custom_call.1} parent=0 // pred_region
    _
  $region85: #{tpu_custom_call.1} parent=0 // pred_fallthru
    _
  // Predicated region
  $region86: #{tpu_custom_call.1} parent=0 // pred_check
    _
  $region87: #{tpu_custom_call.1} parent=0 // pred_check_branch
    %75 = sbr.rel (0) target = $region89
  $region88: #{tpu_custom_call.1} parent=0 // pred_region
    _
  $region89: #{tpu_custom_call.1} parent=0 // pred_fallthru
    _
  // Predicated region
  $region90: #{tpu_custom_call.1} parent=0 // pred_check
    _
  $region91: #{tpu_custom_call.1} parent=0 // pred_check_branch
    %77 = sbr.rel (0) target = $region93
  $region92: #{tpu_custom_call.1} parent=0 // pred_region
    _
  $region93: #{tpu_custom_call.1} parent=0 // pred_fallthru
    _
  // Predicated region
  $region94: #{tpu_custom_call.1} parent=0 // pred_check
    _
  $region95: #{tpu_custom_call.1} parent=0 // pred_check_branch
    %79 = sbr.rel (0) target = $region97
  $region96: #{tpu_custom_call.1} parent=0 // pred_region
    _
  $region97: #{tpu_custom_call.1} parent=0 // pred_fallthru
    _
  // Predicated region
  $region98: #{tpu_custom_call.1} parent=0 // pred_check
    _
  $region99: #{tpu_custom_call.1} parent=0 // pred_check_branch
    %81 = sbr.rel (0) target = $region101
  $region100: #{tpu_custom_call.1} parent=0 // pred_region
    _
  $region101: #{tpu_custom_call.1} parent=0 // pred_fallthru
    _
  %v82 = vld [vmem:[%s0] sm:$0xff]
  %v83 = vld [vmem:[%s0 + $0x8] sm:$0xff]
  %v84 = vld [vmem:[%s0 + $0x10] sm:$0xff]
  %v85 = vld [vmem:[%s0 + $0x18] sm:$0xff]
  %86 = vst [vmem:[#allocation2] sm:$0xff] 0.0
  %87 = vst [vmem:[#allocation2 + $0x8] sm:$0xff] 0.0
  %88 = vst [vmem:[#allocation2 + $0x10] sm:$0xff] 0.0
  %89 = vst [vmem:[#allocation2 + $0x18] sm:$0xff] 0.0
  %90 = vst [vmem:[#allocation2 + $0x20] sm:$0xff] 0.0
  %91 = vst [vmem:[#allocation2 + $0x28] sm:$0xff] 0.0
  %92 = vst [vmem:[#allocation2 + $0x30] sm:$0xff] 0.0
  %93 = vst [vmem:[#allocation2 + $0x38] sm:$0xff] 0.0
  %94 = vst [vmem:[#allocation2 + $0x40] sm:$0xff] 0.0
  %95 = vst [vmem:[#allocation2 + $0x48] sm:$0x3f] 0.0
  %96 = vst [vmem:[#allocation2 + $0x50] sm:$0x3f] 0.0
  %97 = vst [vmem:[#allocation2 + $0x58] sm:$0x3f] 0.0
  %vm98 = vcmask 613376
  %99 = vst.msk [vmem:[#allocation2] sm:$0xff] %vm98, %v82
  %100 = vst.msk [vmem:[#allocation2 + $0x18] sm:$0xff] %vm98, %v83
  %101 = vst.msk [vmem:[#allocation2 + $0x30] sm:$0xff] %vm98, %v84
  %vm102 = vcmask 611328
  %103 = vst.msk [vmem:[#allocation2 + $0x48] sm:$0x3f] %vm102, %v85
  %vm108 = vcmask 1046528
  %v109 = vrot.slane %v82, 1
  %v110 = vrot.slane %v83, 1
  %v111 = vsel %vm108, %v109, %v110
  %v112 = vrot.slane %v84, 1
  %v113 = vsel %vm108, %v110, %v112
  %v114 = vrot.slane %v85, 1
  %v115 = vsel %vm108, %v112, %v114
  %120 = vst.msk [vmem:[#allocation2 + $0x8] sm:$0xff] %vm98, %v111
  %121 = vst.msk [vmem:[#allocation2 + $0x20] sm:$0xff] %vm98, %v113
  %122 = vst.msk [vmem:[#allocation2 + $0x38] sm:$0xff] %vm98, %v115
  %123 = vst.msk [vmem:[#allocation2 + $0x50] sm:$0x3f] %vm102, %v114
  %vm124 = vcmask 1045504
  %v125 = vrot.slane %v82, 2
  %v126 = vrot.slane %v83, 2
  %v127 = vsel %vm124, %v125, %v126
  %v128 = vrot.slane %v84, 2
  %v129 = vsel %vm124, %v126, %v128
  %v130 = vrot.slane %v85, 2
  %v131 = vsel %vm124, %v128, %v130
  %136 = vst.msk [vmem:[#allocation2 + $0x10] sm:$0xff] %vm98, %v127
  %137 = vst.msk [vmem:[#allocation2 + $0x28] sm:$0xff] %vm98, %v129
  %138 = vst.msk [vmem:[#allocation2 + $0x40] sm:$0xff] %vm98, %v131
  %139 = vst.msk [vmem:[#allocation2 + $0x58] sm:$0x3f] %vm102, %v130
  %v140 = vld [vmem:[#allocation2] sm:$0xff]
  %v141 = vld [vmem:[#allocation2 + $0x8] sm:$0xff]
  %v142 = vld [vmem:[#allocation2 + $0x10] sm:$0xff]
  %v143 = vld [vmem:[#allocation2 + $0x18] sm:$0xff]
  %v144 = vld [vmem:[#allocation2 + $0x20] sm:$0xff]
  %v145 = vld [vmem:[#allocation2 + $0x28] sm:$0xff]
  %v146 = vld [vmem:[#allocation2 + $0x30] sm:$0xff]
  %v147 = vld [vmem:[#allocation2 + $0x38] sm:$0xff]
  %v148 = vld [vmem:[#allocation2 + $0x40] sm:$0xff]
  %v149 = vld [vmem:[#allocation2 + $0x48] sm:$0x3f]
  %v150 = vld [vmem:[#allocation2 + $0x50] sm:$0x3f]
  %v151 = vld [vmem:[#allocation2 + $0x58] sm:$0x3f]
  %v152 = vld [vmem:[%s1] sm:$0xff]
  %v153 = vld [vmem:[%s1 + $0x8] sm:$0xff]
  %v154 = vld [vmem:[%s1 + $0x10] sm:$0xff]
  %v155 = vld [vmem:[%s1 + $0x18] sm:$0xff]
  %v156 = vld [vmem:[%s1 + $0x20] sm:$0xff]
  %v157 = vld [vmem:[%s1 + $0x28] sm:$0xff]
  %v158 = vld [vmem:[%s1 + $0x30] sm:$0xff]
  %v159 = vld [vmem:[%s1 + $0x38] sm:$0xff]
  %v160 = vld [vmem:[%s1 + $0x40] sm:$0xff]
  %v161 = vld [vmem:[%s1 + $0x48] sm:$0xff]
  %v162 = vld [vmem:[%s1 + $0x50] sm:$0xff]
  %v163 = vld [vmem:[%s1 + $0x58] sm:$0xff]
  %v164 = vld [vmem:[%s1 + $0x60] sm:$0xff]
  %v165 = vld [vmem:[%s1 + $0x68] sm:$0xff]
  %v166 = vld [vmem:[%s1 + $0x70] sm:$0xff]
  %v167 = vld [vmem:[%s1 + $0x78] sm:$0xff]
  %v168 = vld [vmem:[%s1 + $0x80] sm:$0xff]
  %v169 = vld [vmem:[%s1 + $0x88] sm:$0xff]
  %v170 = vld [vmem:[%s1 + $0x90] sm:$0xff]
  %v171 = vld [vmem:[%s1 + $0x98] sm:$0xff]
  %v172 = vld [vmem:[%s1 + $0xa0] sm:$0xff]
  %v173 = vld [vmem:[%s1 + $0xa8] sm:$0xff]
  %v174 = vld [vmem:[%s1 + $0xb0] sm:$0xff]
  %v175 = vld [vmem:[%s1 + $0xb8] sm:$0xff]
  %v176 = vld [vmem:[%s1 + $0xc0] sm:$0xff]
  %v177 = vld [vmem:[%s1 + $0xc8] sm:$0xff]
  %v178 = vld [vmem:[%s1 + $0xd0] sm:$0xff]
  %v179 = vld [vmem:[%s1 + $0xd8] sm:$0xff]
  %v180 = vld [vmem:[%s1 + $0xe0] sm:$0xff]
  %v181 = vld [vmem:[%s1 + $0xe8] sm:$0xff]
  %v182 = vld [vmem:[%s1 + $0xf0] sm:$0xff]
  %v183 = vld [vmem:[%s1 + $0xf8] sm:$0xff]
  %v184 = vld [vmem:[%s1 + $0x100] sm:$0xff]
  %v185 = vld [vmem:[%s1 + $0x108] sm:$0xff]
  %v186 = vld [vmem:[%s1 + $0x110] sm:$0xff]
  %v187 = vld [vmem:[%s1 + $0x118] sm:$0xff]
  %v188 = vld [vmem:[%s1 + $0x120] sm:$0xff]
  %v189 = vld [vmem:[%s1 + $0x128] sm:$0xff]
  %v190 = vld [vmem:[%s1 + $0x130] sm:$0xff]
  %v191 = vld [vmem:[%s1 + $0x138] sm:$0xff]
  %v192 = vld [vmem:[%s1 + $0x140] sm:$0xff]
  %v193 = vld [vmem:[%s1 + $0x148] sm:$0xff]
  %v194 = vld [vmem:[%s1 + $0x150] sm:$0xff]
  %v195 = vld [vmem:[%s1 + $0x158] sm:$0xff]
  %v196 = vld [vmem:[%s1 + $0x160] sm:$0xff]
  %v197 = vld [vmem:[%s1 + $0x168] sm:$0xff]
  %v198 = vld [vmem:[%s1 + $0x170] sm:$0xff]
  %v199 = vld [vmem:[%s1 + $0x178] sm:$0xff]
  %v200 = vld [vmem:[%s2] sm:$0x1]
  %v202 = vlaneseq
  %v203 = vshrl.u32 %v202, 7
  %v204 = vsub.s32 0, %v203
  %v205 = vrot.slane %v200, %v204
  %207 = vmatprep.subr.mxu0 0.0
  %208 = vmatpush1.msra.mxu0 %v152
  %209 = vmatprep.subr.mxu0 0.0
  %210 = vmatpush1.msra.mxu0 %v153
  %211 = vmatprep.subr.mxu0 0.0
  %212 = vmatpush1.msra.mxu0 %v154
  %213 = vmatprep.subr.mxu0 0.0
  %214 = vmatpush1.msra.mxu0 %v155
  %215 = vmatprep.subr.mxu0 0.0
  %216 = vmatpush1.msra.mxu0 %v156
  %217 = vmatprep.subr.mxu0 0.0
  %218 = vmatpush1.msra.mxu0 %v157
  %219 = vmatprep.subr.mxu0 0.0
  %220 = vmatpush1.msra.mxu0 %v158
  %221 = vmatprep.subr.mxu0 0.0
  %222 = vmatpush1.msra.mxu0 %v159
  %223 = vmatprep.subr.mxu0 0.0
  %224 = vmatpush1.msra.mxu0 %v160
  %225 = vmatprep.subr.mxu0 0.0
  %226 = vmatpush1.msra.mxu0 %v161
  %227 = vmatprep.subr.mxu0 0.0
  %228 = vmatpush1.msra.mxu0 %v162
  %229 = vmatprep.subr.mxu0 0.0
  %230 = vmatpush1.msra.mxu0 %v163
  %231 = vmatprep.subr.mxu0 0.0
  %232 = vmatpush1.msra.mxu0 %v164
  %233 = vmatprep.subr.mxu0 0.0
  %234 = vmatpush1.msra.mxu0 %v165
  %235 = vmatprep.subr.mxu0 0.0
  %236 = vmatpush1.msra.mxu0 %v166
  %237 = vmatprep.subr.mxu0 0.0
  %238 = vmatpush1.msra.mxu0 %v167
  %239 = vmatprep.subr.mxu0 0.0
  %240 = vmatpush1.msra.mxu0 %v168
  %241 = vmatprep.subr.mxu0 0.0
  %242 = vmatpush1.msra.mxu0 %v169
  %243 = vmatprep.subr.mxu0 0.0
  %244 = vmatpush1.msra.mxu0 %v170
  %245 = vmatprep.subr.mxu0 0.0
  %246 = vmatpush1.msra.mxu0 %v171
  %247 = vmatprep.subr.mxu0 0.0
  %248 = vmatpush1.msra.mxu0 %v172
  %249 = vmatprep.subr.mxu0 0.0
  %250 = vmatpush1.msra.mxu0 %v173
  %251 = vmatprep.subr.mxu0 0.0
  %252 = vmatpush1.msra.mxu0 %v174
  %253 = vmatprep.subr.mxu0 0.0
  %254 = vmatpush1.msra.mxu0 %v175
  %255 = vmatprep.subr.mxu0 0.0
  %256 = vmatpush1.msra.mxu0 %v176
  %257 = vmatprep.subr.mxu0 0.0
  %258 = vmatpush1.msra.mxu0 %v177
  %259 = vmatprep.subr.mxu0 0.0
  %260 = vmatpush1.msra.mxu0 %v178
  %261 = vmatprep.subr.mxu0 0.0
  %262 = vmatpush1.msra.mxu0 %v179
  %263 = vmatprep.subr.mxu0 0.0
  %264 = vmatpush1.msra.mxu0 %v180
  %265 = vmatprep.subr.mxu0 0.0
  %266 = vmatpush1.msra.mxu0 %v181
  %267 = vmatprep.subr.mxu0 0.0
  %268 = vmatpush1.msra.mxu0 %v182
  %269 = vmatprep.subr.mxu0 0.0
  %270 = vmatpush1.msra.mxu0 %v183
  %271 = vmatprep.mubr.f32.mxu0 %v141
  %272 = vmatmul.mubr.f32.gmra.mrb[0].mxu0 %v140
  %v273 = vpop.f32.mrb[0].mxu0
  %v274 = vadd.f32 %v205, %v273
  %v275 = vpop.f32.mrb[0].mxu0
  %276 = vmatprep.mubr.f32.mxu0 %v144
  %277 = vmatmul.mubr.f32.gmra.mrb[0].mxu0 %v143
  %v278 = vpop.f32.mrb[0].mxu0
  %v279 = vadd.f32 %v205, %v278
  %v280 = vpop.f32.mrb[0].mxu0
  %281 = vmatprep.mubr.f32.mxu0 %v147
  %282 = vmatmul.mubr.f32.gmra.mrb[0].mxu0 %v146
  %v283 = vpop.f32.mrb[0].mxu0
  %v284 = vadd.f32 %v205, %v283
  %v285 = vpop.f32.mrb[0].mxu0
  %286 = vmatprep.mubr.f32.mxu0 %v150
  %287 = vmatmul.mubr.f32.gmra.mrb[0].mxu0 %v149
  %v288 = vpop.f32.mrb[0].mxu0
  %v289 = vadd.f32 %v205, %v288
  %v290 = vpop.f32.mrb[0].mxu0
  %291 = vdwg.mxu0
  %292 = vmatprep.subr.mxu0 0.0
  %293 = vmatpush1.msra.mxu0 %v184
  %294 = vmatprep.subr.mxu0 0.0
  %295 = vmatpush1.msra.mxu0 %v185
  %296 = vmatprep.subr.mxu0 0.0
  %297 = vmatpush1.msra.mxu0 %v186
  %298 = vmatprep.subr.mxu0 0.0
  %299 = vmatpush1.msra.mxu0 %v187
  %300 = vmatprep.subr.mxu0 0.0
  %301 = vmatpush1.msra.mxu0 %v188
  %302 = vmatprep.subr.mxu0 0.0
  %303 = vmatpush1.msra.mxu0 %v189
  %304 = vmatprep.subr.mxu0 0.0
  %305 = vmatpush1.msra.mxu0 %v190
  %306 = vmatprep.subr.mxu0 0.0
  %307 = vmatpush1.msra.mxu0 %v191
  %308 = vmatprep.subr.mxu0 0.0
  %309 = vmatpush1.msra.mxu0 %v192
  %310 = vmatprep.subr.mxu0 0.0
  %311 = vmatpush1.msra.mxu0 %v193
  %312 = vmatprep.subr.mxu0 0.0
  %313 = vmatpush1.msra.mxu0 %v194
  %314 = vmatprep.subr.mxu0 0.0
  %315 = vmatpush1.msra.mxu0 %v195
  %316 = vmatprep.subr.mxu0 0.0
  %317 = vmatpush1.msra.mxu0 %v196
  %318 = vmatprep.subr.mxu0 0.0
  %319 = vmatpush1.msra.mxu0 %v197
  %320 = vmatprep.subr.mxu0 0.0
  %321 = vmatpush1.msra.mxu0 %v198
  %322 = vmatprep.subr.mxu0 0.0
  %323 = vmatpush1.msra.mxu0 %v199
  %324 = vmatprep.subr.mxu0 0.0
  %325 = vmatpush1.msra.mxu0 0.0
  %326 = vmatprep.subr.mxu0 0.0
  %327 = vmatpush1.msra.mxu0 0.0
  %328 = vmatprep.subr.mxu0 0.0
  %329 = vmatpush1.msra.mxu0 0.0
  %330 = vmatprep.subr.mxu0 0.0
  %331 = vmatpush1.msra.mxu0 0.0
  %332 = vmatprep.subr.mxu0 0.0
  %333 = vmatpush1.msra.mxu0 0.0
  %334 = vmatprep.subr.mxu0 0.0
  %335 = vmatpush1.msra.mxu0 0.0
  %336 = vmatprep.subr.mxu0 0.0
  %337 = vmatpush1.msra.mxu0 0.0
  %338 = vmatprep.subr.mxu0 0.0
  %339 = vmatpush1.msra.mxu0 0.0
  %340 = vmatprep.subr.mxu0 0.0
  %341 = vmatpush1.msra.mxu0 0.0
  %342 = vmatprep.subr.mxu0 0.0
  %343 = vmatpush1.msra.mxu0 0.0
  %344 = vmatprep.subr.mxu0 0.0
  %345 = vmatpush1.msra.mxu0 0.0
  %346 = vmatprep.subr.mxu0 0.0
  %347 = vmatpush1.msra.mxu0 0.0
  %348 = vmatprep.subr.mxu0 0.0
  %349 = vmatpush1.msra.mxu0 0.0
  %350 = vmatprep.subr.mxu0 0.0
  %351 = vmatpush1.msra.mxu0 0.0
  %352 = vmatprep.subr.mxu0 0.0
  %353 = vmatpush1.msra.mxu0 0.0
  %354 = vmatprep.subr.mxu0 0.0
  %355 = vmatpush1.msra.mxu0 0.0
  %356 = vmatprep.mubr.f32.mxu0 0.0
  %357 = vmatmul.mubr.f32.gmra.mrb[0].mxu0 %v142
  %v358 = vpop.f32.mrb[0].mxu0
  %v359 = vadd.f32 %v274, %v358
  %v360 = vpop.f32.mrb[0].mxu0
  %361 = vmatprep.mubr.f32.mxu0 0.0
  %362 = vmatmul.mubr.f32.gmra.mrb[0].mxu0 %v145
  %v363 = vpop.f32.mrb[0].mxu0
  %v364 = vadd.f32 %v279, %v363
  %v365 = vpop.f32.mrb[0].mxu0
  %366 = vmatprep.mubr.f32.mxu0 0.0
  %367 = vmatmul.mubr.f32.gmra.mrb[0].mxu0 %v148
  %v368 = vpop.f32.mrb[0].mxu0
  %v369 = vadd.f32 %v284, %v368
  %v370 = vpop.f32.mrb[0].mxu0
  %371 = vmatprep.mubr.f32.mxu0 0.0
  %372 = vmatmul.mubr.f32.gmra.mrb[0].mxu0 %v151
  %v373 = vpop.f32.mrb[0].mxu0
  %v374 = vadd.f32 %v289, %v373
  %v375 = vpop.f32.mrb[0].mxu0
  %376 = vdwg.mxu0
  %v377 = vld [vmem:[%s5] sm:$0xff]
  %v378 = vld [vmem:[%s5 + $0x8] sm:$0x3f]
  %vm379 = vcmask 244736
  %v381 = vsel %vm379, %v377, 0
  %v384 = vsel %vm379, %v378, 0
  %v387 = vsel %vm124, %v374, 0
  %389 = vmatprep.subr.mxu0 0.0
  %390 = vmatpush1.msra.mxu0 %v359
  %391 = vmatprep.subr.mxu0 0.0
  %392 = vmatpush1.msra.mxu0 %v364
  %393 = vmatprep.subr.mxu0 0.0
  %394 = vmatpush1.msra.mxu0 %v369
  %395 = vmatprep.subr.mxu0 0.0
  %396 = vmatpush1.msra.mxu0 %v387
  %397 = vmatprep.subr.mxu0 0.0
  %398 = vmatpush1.msra.mxu0 0.0
  %399 = vmatprep.subr.mxu0 0.0
  %400 = vmatpush1.msra.mxu0 0.0
  %401 = vmatprep.subr.mxu0 0.0
  %402 = vmatpush1.msra.mxu0 0.0
  %403 = vmatprep.subr.mxu0 0.0
  %404 = vmatpush1.msra.mxu0 0.0
  %405 = vmatprep.subr.mxu0 0.0
  %406 = vmatpush1.msra.mxu0 0.0
  %407 = vmatprep.subr.mxu0 0.0
  %408 = vmatpush1.msra.mxu0 0.0
  %409 = vmatprep.subr.mxu0 0.0
  %410 = vmatpush1.msra.mxu0 0.0
  %411 = vmatprep.subr.mxu0 0.0
  %412 = vmatpush1.msra.mxu0 0.0
  %413 = vmatprep.subr.mxu0 0.0
  %414 = vmatpush1.msra.mxu0 0.0
  %415 = vmatprep.subr.mxu0 0.0
  %416 = vmatpush1.msra.mxu0 0.0
  %417 = vmatprep.subr.mxu0 0.0
  %418 = vmatpush1.msra.mxu0 0.0
  %419 = vmatprep.subr.mxu0 0.0
  %420 = vmatpush1.msra.mxu0 0.0
  %421 = vmatprep.subr.mxu0 0.0
  %422 = vmatpush1.msra.mxu0 0.0
  %423 = vmatprep.subr.mxu0 0.0
  %424 = vmatpush1.msra.mxu0 0.0
  %425 = vmatprep.subr.mxu0 0.0
  %426 = vmatpush1.msra.mxu0 0.0
  %427 = vmatprep.subr.mxu0 0.0
  %428 = vmatpush1.msra.mxu0 0.0
  %429 = vmatprep.subr.mxu0 0.0
  %430 = vmatpush1.msra.mxu0 0.0
  %431 = vmatprep.subr.mxu0 0.0
  %432 = vmatpush1.msra.mxu0 0.0
  %433 = vmatprep.subr.mxu0 0.0
  %434 = vmatpush1.msra.mxu0 0.0
  %435 = vmatprep.subr.mxu0 0.0
  %436 = vmatpush1.msra.mxu0 0.0
  %437 = vmatprep.subr.mxu0 0.0
  %438 = vmatpush1.msra.mxu0 0.0
  %439 = vmatprep.subr.mxu0 0.0
  %440 = vmatpush1.msra.mxu0 0.0
  %441 = vmatprep.subr.mxu0 0.0
  %442 = vmatpush1.msra.mxu0 0.0
  %443 = vmatprep.subr.mxu0 0.0
  %444 = vmatpush1.msra.mxu0 0.0
  %445 = vmatprep.subr.mxu0 0.0
  %446 = vmatpush1.msra.mxu0 0.0
  %447 = vmatprep.subr.mxu0 0.0
  %448 = vmatpush1.msra.mxu0 0.0
  %449 = vmatprep.subr.mxu0 0.0
  %450 = vmatpush1.msra.mxu0 0.0
  %451 = vmatprep.subr.mxu0 0.0
  %452 = vmatpush1.msra.mxu0 0.0
  %453 = vmatprep.mubr.f32.mxu0 0.0
  %454 = vmatmul.mubr.f32.gmra.mrb[0].mxu0 %v381
  %v455 = vpop.f32.mrb[0].mxu0
  %v456 = vadd.f32 0.0, %v455
  %v457 = vpop.f32.mrb[0].mxu0
  %458 = vmatprep.mubr.f32.mxu0 0.0
  %459 = vmatmul.mubr.f32.gmra.mrb[0].mxu0 %v384
  %v460 = vpop.f32.mrb[0].mxu0
  %v461 = vadd.f32 0.0, %v460
  %v462 = vpop.f32.mrb[0].mxu0
  %463 = vdwg.mxu0
  %v464 = vld [vmem:[%s6] sm:$0xff]
  %v465 = vld [vmem:[%s6 + $0x8] sm:$0x3f]
  %v467 = vsel %vm379, %v464, 0
  %v470 = vsel %vm379, %v465, 0
  %472 = vmatprep.subr.mxu0 0.0
  %473 = vmatpush1.msra.mxu0 %v359
  %474 = vmatprep.subr.mxu0 0.0
  %475 = vmatpush1.msra.mxu0 %v364
  %476 = vmatprep.subr.mxu0 0.0
  %477 = vmatpush1.msra.mxu0 %v369
  %478 = vmatprep.subr.mxu0 0.0
  %479 = vmatpush1.msra.mxu0 %v387
  %480 = vmatprep.subr.mxu0 0.0
  %481 = vmatpush1.msra.mxu0 0.0
  %482 = vmatprep.subr.mxu0 0.0
  %483 = vmatpush1.msra.mxu0 0.0
  %484 = vmatprep.subr.mxu0 0.0
  %485 = vmatpush1.msra.mxu0 0.0
  %486 = vmatprep.subr.mxu0 0.0
  %487 = vmatpush1.msra.mxu0 0.0
  %488 = vmatprep.subr.mxu0 0.0
  %489 = vmatpush1.msra.mxu0 0.0
  %490 = vmatprep.subr.mxu0 0.0
  %491 = vmatpush1.msra.mxu0 0.0
  %492 = vmatprep.subr.mxu0 0.0
  %493 = vmatpush1.msra.mxu0 0.0
  %494 = vmatprep.subr.mxu0 0.0
  %495 = vmatpush1.msra.mxu0 0.0
  %496 = vmatprep.subr.mxu0 0.0
  %497 = vmatpush1.msra.mxu0 0.0
  %498 = vmatprep.subr.mxu0 0.0
  %499 = vmatpush1.msra.mxu0 0.0
  %500 = vmatprep.subr.mxu0 0.0
  %501 = vmatpush1.msra.mxu0 0.0
  %502 = vmatprep.subr.mxu0 0.0
  %503 = vmatpush1.msra.mxu0 0.0
  %504 = vmatprep.subr.mxu0 0.0
  %505 = vmatpush1.msra.mxu0 0.0
  %506 = vmatprep.subr.mxu0 0.0
  %507 = vmatpush1.msra.mxu0 0.0
  %508 = vmatprep.subr.mxu0 0.0
  %509 = vmatpush1.msra.mxu0 0.0
  %510 = vmatprep.subr.mxu0 0.0
  %511 = vmatpush1.msra.mxu0 0.0
  %512 = vmatprep.subr.mxu0 0.0
  %513 = vmatpush1.msra.mxu0 0.0
  %514 = vmatprep.subr.mxu0 0.0
  %515 = vmatpush1.msra.mxu0 0.0
  %516 = vmatprep.subr.mxu0 0.0
  %517 = vmatpush1.msra.mxu0 0.0
  %518 = vmatprep.subr.mxu0 0.0
  %519 = vmatpush1.msra.mxu0 0.0
  %520 = vmatprep.subr.mxu0 0.0
  %521 = vmatpush1.msra.mxu0 0.0
  %522 = vmatprep.subr.mxu0 0.0
  %523 = vmatpush1.msra.mxu0 0.0
  %524 = vmatprep.subr.mxu0 0.0
  %525 = vmatpush1.msra.mxu0 0.0
  %526 = vmatprep.subr.mxu0 0.0
  %527 = vmatpush1.msra.mxu0 0.0
  %528 = vmatprep.subr.mxu0 0.0
  %529 = vmatpush1.msra.mxu0 0.0
  %530 = vmatprep.subr.mxu0 0.0
  %531 = vmatpush1.msra.mxu0 0.0
  %532 = vmatprep.subr.mxu0 0.0
  %533 = vmatpush1.msra.mxu0 0.0
  %534 = vmatprep.subr.mxu0 0.0
  %535 = vmatpush1.msra.mxu0 0.0
  %536 = vmatprep.mubr.f32.mxu0 0.0
  %537 = vmatmul.mubr.f32.gmra.mrb[0].mxu0 %v467
  %v538 = vpop.f32.mrb[0].mxu0
  %v539 = vadd.f32 0.0, %v538
  %v540 = vpop.f32.mrb[0].mxu0
  %541 = vmatprep.mubr.f32.mxu0 0.0
  %542 = vmatmul.mubr.f32.gmra.mrb[0].mxu0 %v470
  %v543 = vpop.f32.mrb[0].mxu0
  %v544 = vadd.f32 0.0, %v543
  %v545 = vpop.f32.mrb[0].mxu0
  %546 = vdwg.mxu0
  %v547 = vmax.f32 %v456, %v539
  %v548 = vmax.f32 %v461, %v544
  %v549 = vmax.f32 %v547, 0.0
  %v550 = vmax.f32 %v548, 0.0
  %vm551 = vcmask 130048
  %v552 = vsel %vm551, %v549, 0.0
  %vm553 = vcmask 128000
  %v554 = vsel %vm553, %v550, 0.0
  %v555 = vadd.f32 %v552, %v554
  %v556 = vrot.slane %v555, 4
  %v557 = vadd.f32 %v555, %v556
  %v558 = vrot.slane %v557, 2
  %v559 = vadd.f32 %v557, %v558
  %v560 = vrot.slane %v559, 1
  %v561 = vadd.f32 %v559, %v560
  %v562 = vrcp.pop 14.0
  %v563 = vmul.f32 %v561, %v562
  %v564 = vsub.f32 %v549, %v563
  %v565 = vsub.f32 %v550, %v563
  %v566 = vmul.f32 %v564, %v564
  %v567 = vmul.f32 %v565, %v565
  %v568 = vsel %vm551, %v566, 0.0
  %v569 = vsel %vm553, %v567, 0.0
  %v570 = vadd.f32 %v568, %v569
  %v571 = vrot.slane %v570, 4
  %v572 = vadd.f32 %v570, %v571
  %v573 = vrot.slane %v572, 2
  %v574 = vadd.f32 %v572, %v573
  %v575 = vrot.slane %v574, 1
  %v576 = vadd.f32 %v574, %v575
  %v577 = vmul.f32 %v576, %v562
  %v578 = vadd.f32 %v577, 1e-05
  %v579 = vrsqrt.pop %v578
  %v580 = vmul.f32 %v564, %v579
  %v581 = vmul.f32 %v565, %v579
  %v582 = vld [vmem:[%s3] sm:$0x1]
  %v584 = vlaneseq
  %v585 = vshrl.u32 %v584, 7
  %v586 = vsub.s32 0, %v585
  %v587 = vrot.slane %v582, %v586
  %v589 = vmul.f32 %v580, %v587
  %v590 = vmul.f32 %v581, %v587
  %v591 = vld [vmem:[%s4] sm:$0x1]
  %v593 = vlaneseq
  %v594 = vshrl.u32 %v593, 7
  %v595 = vsub.s32 0, %v594
  %v596 = vrot.slane %v591, %v595
  %v598 = vadd.f32 %v589, %v596
  %v599 = vadd.f32 %v590, %v596
  %600 = vst [vmem:[#allocation3] sm:$0xff] 0.0
  %601 = vst [vmem:[#allocation3 + $0x8] sm:$0xff] 0.0
  %602 = vst [vmem:[#allocation3 + $0x10] sm:$0xff] 0.0
  %603 = vst [vmem:[#allocation3 + $0x18] sm:$0xf] 0.0
  %604 = vst [vmem:[#allocation3 + $0x20] sm:$0xf] 0.0
  %605 = vst [vmem:[#allocation3 + $0x28] sm:$0xf] 0.0
  %606 = vst.msk [vmem:[#allocation3] sm:$0xff] %vm551, %v598
  %vm607 = vcmask 125952
  %608 = vst.msk [vmem:[#allocation3 + $0x18] sm:$0xf] %vm607, %v599
  %v611 = vrot.slane %v598, 1
  %v612 = vrot.slane %v599, 1
  %v613 = vsel %vm108, %v611, %v612
  %616 = vst.msk [vmem:[#allocation3 + $0x8] sm:$0xff] %vm551, %v613
  %617 = vst.msk [vmem:[#allocation3 + $0x20] sm:$0xf] %vm607, %v612
  %v618 = vrot.slane %v598, 2
  %v619 = vrot.slane %v599, 2
  %v620 = vsel %vm124, %v618, %v619
  %623 = vst.msk [vmem:[#allocation3 + $0x10] sm:$0xff] %vm551, %v620
  %624 = vst.msk [vmem:[#allocation3 + $0x28] sm:$0xf] %vm607, %v619
  %v625 = vld [vmem:[#allocation3] sm:$0xff]
  %v626 = vld [vmem:[#allocation3 + $0x8] sm:$0xff]
  %v627 = vld [vmem:[#allocation3 + $0x10] sm:$0xff]
  %v628 = vld [vmem:[#allocation3 + $0x18] sm:$0xf]
  %v629 = vld [vmem:[#allocation3 + $0x20] sm:$0xf]
  %v630 = vld [vmem:[#allocation3 + $0x28] sm:$0xf]
  %v631 = vld [vmem:[%s7] sm:$0xff]
  %v632 = vld [vmem:[%s7 + $0x8] sm:$0xff]
  %v633 = vld [vmem:[%s7 + $0x10] sm:$0xff]
  %v634 = vld [vmem:[%s7 + $0x18] sm:$0xff]
  %v635 = vld [vmem:[%s7 + $0x20] sm:$0xff]
  %v636 = vld [vmem:[%s7 + $0x28] sm:$0xff]
  %v637 = vld [vmem:[%s7 + $0x30] sm:$0xff]
  %v638 = vld [vmem:[%s7 + $0x38] sm:$0xff]
  %v639 = vld [vmem:[%s7 + $0x40] sm:$0xff]
  %v640 = vld [vmem:[%s7 + $0x48] sm:$0xff]
  %v641 = vld [vmem:[%s7 + $0x50] sm:$0xff]
  %v642 = vld [vmem:[%s7 + $0x58] sm:$0xff]
  %v643 = vld [vmem:[%s7 + $0x60] sm:$0xff]
  %v644 = vld [vmem:[%s7 + $0x68] sm:$0xff]
  %v645 = vld [vmem:[%s7 + $0x70] sm:$0xff]
  %v646 = vld [vmem:[%s7 + $0x78] sm:$0xff]
  %v647 = vld [vmem:[%s7 + $0x80] sm:$0xff]
  %v648 = vld [vmem:[%s7 + $0x88] sm:$0xff]
  %v649 = vld [vmem:[%s7 + $0x90] sm:$0xff]
  %v650 = vld [vmem:[%s7 + $0x98] sm:$0xff]
  %v651 = vld [vmem:[%s7 + $0xa0] sm:$0xff]
  %v652 = vld [vmem:[%s7 + $0xa8] sm:$0xff]
  %v653 = vld [vmem:[%s7 + $0xb0] sm:$0xff]
  %v654 = vld [vmem:[%s7 + $0xb8] sm:$0xff]
  %v655 = vld [vmem:[%s7 + $0xc0] sm:$0xff]
  %v656 = vld [vmem:[%s7 + $0xc8] sm:$0xff]
  %v657 = vld [vmem:[%s7 + $0xd0] sm:$0xff]
  %v658 = vld [vmem:[%s7 + $0xd8] sm:$0xff]
  %v659 = vld [vmem:[%s7 + $0xe0] sm:$0xff]
  %v660 = vld [vmem:[%s7 + $0xe8] sm:$0xff]
  %v661 = vld [vmem:[%s7 + $0xf0] sm:$0xff]
  %v662 = vld [vmem:[%s7 + $0xf8] sm:$0xff]
  %v663 = vld [vmem:[%s7 + $0x100] sm:$0xff]
  %v664 = vld [vmem:[%s7 + $0x108] sm:$0xff]
  %v665 = vld [vmem:[%s7 + $0x110] sm:$0xff]
  %v666 = vld [vmem:[%s7 + $0x118] sm:$0xff]
  %v667 = vld [vmem:[%s7 + $0x120] sm:$0xff]
  %v668 = vld [vmem:[%s7 + $0x128] sm:$0xff]
  %v669 = vld [vmem:[%s7 + $0x130] sm:$0xff]
  %v670 = vld [vmem:[%s7 + $0x138] sm:$0xff]
  %v671 = vld [vmem:[%s7 + $0x140] sm:$0xff]
  %v672 = vld [vmem:[%s7 + $0x148] sm:$0xff]
  %v673 = vld [vmem:[%s7 + $0x150] sm:$0xff]
  %v674 = vld [vmem:[%s7 + $0x158] sm:$0xff]
  %v675 = vld [vmem:[%s7 + $0x160] sm:$0xff]
  %v676 = vld [vmem:[%s7 + $0x168] sm:$0xff]
  %v677 = vld [vmem:[%s7 + $0x170] sm:$0xff]
  %v678 = vld [vmem:[%s7 + $0x178] sm:$0xff]
  %v679 = vld [vmem:[%s8] sm:$0x1]
  %v681 = vlaneseq
  %v682 = vshrl.u32 %v681, 7
  %v683 = vsub.s32 0, %v682
  %v684 = vrot.slane %v679, %v683
  %686 = vmatprep.subr.mxu0 0.0
  %687 = vmatpush1.msra.mxu0 %v631
  %688 = vmatprep.subr.mxu0 0.0
  %689 = vmatpush1.msra.mxu0 %v632
  %690 = vmatprep.subr.mxu0 0.0
  %691 = vmatpush1.msra.mxu0 %v633
  %692 = vmatprep.subr.mxu0 0.0
  %693 = vmatpush1.msra.mxu0 %v634
  %694 = vmatprep.subr.mxu0 0.0
  %695 = vmatpush1.msra.mxu0 %v635
  %696 = vmatprep.subr.mxu0 0.0
  %697 = vmatpush1.msra.mxu0 %v636
  %698 = vmatprep.subr.mxu0 0.0
  %699 = vmatpush1.msra.mxu0 %v637
  %700 = vmatprep.subr.mxu0 0.0
  %701 = vmatpush1.msra.mxu0 %v638
  %702 = vmatprep.subr.mxu0 0.0
  %703 = vmatpush1.msra.mxu0 %v639
  %704 = vmatprep.subr.mxu0 0.0
  %705 = vmatpush1.msra.mxu0 %v640
  %706 = vmatprep.subr.mxu0 0.0
  %707 = vmatpush1.msra.mxu0 %v641
  %708 = vmatprep.subr.mxu0 0.0
  %709 = vmatpush1.msra.mxu0 %v642
  %710 = vmatprep.subr.mxu0 0.0
  %711 = vmatpush1.msra.mxu0 %v643
  %712 = vmatprep.subr.mxu0 0.0
  %713 = vmatpush1.msra.mxu0 %v644
  %714 = vmatprep.subr.mxu0 0.0
  %715 = vmatpush1.msra.mxu0 %v645
  %716 = vmatprep.subr.mxu0 0.0
  %717 = vmatpush1.msra.mxu0 %v646
  %718 = vmatprep.subr.mxu0 0.0
  %719 = vmatpush1.msra.mxu0 %v647
  %720 = vmatprep.subr.mxu0 0.0
  %721 = vmatpush1.msra.mxu0 %v648
  %722 = vmatprep.subr.mxu0 0.0
  %723 = vmatpush1.msra.mxu0 %v649
  %724 = vmatprep.subr.mxu0 0.0
  %725 = vmatpush1.msra.mxu0 %v650
  %726 = vmatprep.subr.mxu0 0.0
  %727 = vmatpush1.msra.mxu0 %v651
  %728 = vmatprep.subr.mxu0 0.0
  %729 = vmatpush1.msra.mxu0 %v652
  %730 = vmatprep.subr.mxu0 0.0
  %731 = vmatpush1.msra.mxu0 %v653
  %732 = vmatprep.subr.mxu0 0.0
  %733 = vmatpush1.msra.mxu0 %v654
  %734 = vmatprep.subr.mxu0 0.0
  %735 = vmatpush1.msra.mxu0 %v655
  %736 = vmatprep.subr.mxu0 0.0
  %737 = vmatpush1.msra.mxu0 %v656
  %738 = vmatprep.subr.mxu0 0.0
  %739 = vmatpush1.msra.mxu0 %v657
  %740 = vmatprep.subr.mxu0 0.0
  %741 = vmatpush1.msra.mxu0 %v658
  %742 = vmatprep.subr.mxu0 0.0
  %743 = vmatpush1.msra.mxu0 %v659
  %744 = vmatprep.subr.mxu0 0.0
  %745 = vmatpush1.msra.mxu0 %v660
  %746 = vmatprep.subr.mxu0 0.0
  %747 = vmatpush1.msra.mxu0 %v661
  %748 = vmatprep.subr.mxu0 0.0
  %749 = vmatpush1.msra.mxu0 %v662
  %750 = vmatprep.mubr.f32.mxu0 %v626
  %751 = vmatmul.mubr.f32.gmra.mrb[0].mxu0 %v625
  %v752 = vpop.f32.mrb[0].mxu0
  %v753 = vadd.f32 %v684, %v752
  %v754 = vpop.f32.mrb[0].mxu0
  %755 = vmatprep.mubr.f32.mxu0 %v629
  %756 = vmatmul.mubr.f32.gmra.mrb[0].mxu0 %v628
  %v757 = vpop.f32.mrb[0].mxu0
  %v758 = vadd.f32 %v684, %v757
  %v759 = vpop.f32.mrb[0].mxu0
  %760 = vdwg.mxu0
  %761 = vmatprep.subr.mxu0 0.0
  %762 = vmatpush1.msra.mxu0 %v663
  %763 = vmatprep.subr.mxu0 0.0
  %764 = vmatpush1.msra.mxu0 %v664
  %765 = vmatprep.subr.mxu0 0.0
  %766 = vmatpush1.msra.mxu0 %v665
  %767 = vmatprep.subr.mxu0 0.0
  %768 = vmatpush1.msra.mxu0 %v666
  %769 = vmatprep.subr.mxu0 0.0
  %770 = vmatpush1.msra.mxu0 %v667
  %771 = vmatprep.subr.mxu0 0.0
  %772 = vmatpush1.msra.mxu0 %v668
  %773 = vmatprep.subr.mxu0 0.0
  %774 = vmatpush1.msra.mxu0 %v669
  %775 = vmatprep.subr.mxu0 0.0
  %776 = vmatpush1.msra.mxu0 %v670
  %777 = vmatprep.subr.mxu0 0.0
  %778 = vmatpush1.msra.mxu0 %v671
  %779 = vmatprep.subr.mxu0 0.0
  %780 = vmatpush1.msra.mxu0 %v672
  %781 = vmatprep.subr.mxu0 0.0
  %782 = vmatpush1.msra.mxu0 %v673
  %783 = vmatprep.subr.mxu0 0.0
  %784 = vmatpush1.msra.mxu0 %v674
  %785 = vmatprep.subr.mxu0 0.0
  %786 = vmatpush1.msra.mxu0 %v675
  %787 = vmatprep.subr.mxu0 0.0
  %788 = vmatpush1.msra.mxu0 %v676
  %789 = vmatprep.subr.mxu0 0.0
  %790 = vmatpush1.msra.mxu0 %v677
  %791 = vmatprep.subr.mxu0 0.0
  %792 = vmatpush1.msra.mxu0 %v678
  %793 = vmatprep.subr.mxu0 0.0
  %794 = vmatpush1.msra.mxu0 0.0
  %795 = vmatprep.subr.mxu0 0.0
  %796 = vmatpush1.msra.mxu0 0.0
  %797 = vmatprep.subr.mxu0 0.0
  %798 = vmatpush1.msra.mxu0 0.0
  %799 = vmatprep.subr.mxu0 0.0
  %800 = vmatpush1.msra.mxu0 0.0
  %801 = vmatprep.subr.mxu0 0.0
  %802 = vmatpush1.msra.mxu0 0.0
  %803 = vmatprep.subr.mxu0 0.0
  %804 = vmatpush1.msra.mxu0 0.0
  %805 = vmatprep.subr.mxu0 0.0
  %806 = vmatpush1.msra.mxu0 0.0
  %807 = vmatprep.subr.mxu0 0.0
  %808 = vmatpush1.msra.mxu0 0.0
  %809 = vmatprep.subr.mxu0 0.0
  %810 = vmatpush1.msra.mxu0 0.0
  %811 = vmatprep.subr.mxu0 0.0
  %812 = vmatpush1.msra.mxu0 0.0
  %813 = vmatprep.subr.mxu0 0.0
  %814 = vmatpush1.msra.mxu0 0.0
  %815 = vmatprep.subr.mxu0 0.0
  %816 = vmatpush1.msra.mxu0 0.0
  %817 = vmatprep.subr.mxu0 0.0
  %818 = vmatpush1.msra.mxu0 0.0
  %819 = vmatprep.subr.mxu0 0.0
  %820 = vmatpush1.msra.mxu0 0.0
  %821 = vmatprep.subr.mxu0 0.0
  %822 = vmatpush1.msra.mxu0 0.0
  %823 = vmatprep.subr.mxu0 0.0
  %824 = vmatpush1.msra.mxu0 0.0
  %825 = vmatprep.mubr.f32.mxu0 0.0
  %826 = vmatmul.mubr.f32.gmra.mrb[0].mxu0 %v627
  %v827 = vpop.f32.mrb[0].mxu0
  %v828 = vadd.f32 %v753, %v827
  %v829 = vpop.f32.mrb[0].mxu0
  %830 = vmatprep.mubr.f32.mxu0 0.0
  %831 = vmatmul.mubr.f32.gmra.mrb[0].mxu0 %v630
  %v832 = vpop.f32.mrb[0].mxu0
  %v833 = vadd.f32 %v758, %v832
  %v834 = vpop.f32.mrb[0].mxu0
  %835 = vdwg.mxu0
  %v836 = vld [vmem:[%s11] sm:$0xf]
  %vm837 = vcmask 97280
  %v839 = vsel %vm837, %v836, 0
  %vm841 = vcmask 1043456
  %v843 = vsel %vm841, %v833, 0
  %845 = vmatprep.subr.mxu0 0.0
  %846 = vmatpush1.msra.mxu0 %v828
  %847 = vmatprep.subr.mxu0 0.0
  %848 = vmatpush1.msra.mxu0 %v843
  %849 = vmatprep.subr.mxu0 0.0
  %850 = vmatpush1.msra.mxu0 0.0
  %851 = vmatprep.subr.mxu0 0.0
  %852 = vmatpush1.msra.mxu0 0.0
  %853 = vmatprep.subr.mxu0 0.0
  %854 = vmatpush1.msra.mxu0 0.0
  %855 = vmatprep.subr.mxu0 0.0
  %856 = vmatpush1.msra.mxu0 0.0
  %857 = vmatprep.subr.mxu0 0.0
  %858 = vmatpush1.msra.mxu0 0.0
  %859 = vmatprep.subr.mxu0 0.0
  %860 = vmatpush1.msra.mxu0 0.0
  %861 = vmatprep.subr.mxu0 0.0
  %862 = vmatpush1.msra.mxu0 0.0
  %863 = vmatprep.subr.mxu0 0.0
  %864 = vmatpush1.msra.mxu0 0.0
  %865 = vmatprep.subr.mxu0 0.0
  %866 = vmatpush1.msra.mxu0 0.0
  %867 = vmatprep.subr.mxu0 0.0
  %868 = vmatpush1.msra.mxu0 0.0
  %869 = vmatprep.subr.mxu0 0.0
  %870 = vmatpush1.msra.mxu0 0.0
  %871 = vmatprep.subr.mxu0 0.0
  %872 = vmatpush1.msra.mxu0 0.0
  %873 = vmatprep.subr.mxu0 0.0
  %874 = vmatpush1.msra.mxu0 0.0
  %875 = vmatprep.subr.mxu0 0.0
  %876 = vmatpush1.msra.mxu0 0.0
  %877 = vmatprep.subr.mxu0 0.0
  %878 = vmatpush1.msra.mxu0 0.0
  %879 = vmatprep.subr.mxu0 0.0
  %880 = vmatpush1.msra.mxu0 0.0
  %881 = vmatprep.subr.mxu0 0.0
  %882 = vmatpush1.msra.mxu0 0.0
  %883 = vmatprep.subr.mxu0 0.0
  %884 = vmatpush1.msra.mxu0 0.0
  %885 = vmatprep.subr.mxu0 0.0
  %886 = vmatpush1.msra.mxu0 0.0
  %887 = vmatprep.subr.mxu0 0.0
  %888 = vmatpush1.msra.mxu0 0.0
  %889 = vmatprep.subr.mxu0 0.0
  %890 = vmatpush1.msra.mxu0 0.0
  %891 = vmatprep.subr.mxu0 0.0
  %892 = vmatpush1.msra.mxu0 0.0
  %893 = vmatprep.subr.mxu0 0.0
  %894 = vmatpush1.msra.mxu0 0.0
  %895 = vmatprep.subr.mxu0 0.0
  %896 = vmatpush1.msra.mxu0 0.0
  %897 = vmatprep.subr.mxu0 0.0
  %898 = vmatpush1.msra.mxu0 0.0
  %899 = vmatprep.subr.mxu0 0.0
  %900 = vmatpush1.msra.mxu0 0.0
  %901 = vmatprep.subr.mxu0 0.0
  %902 = vmatpush1.msra.mxu0 0.0
  %903 = vmatprep.subr.mxu0 0.0
  %904 = vmatpush1.msra.mxu0 0.0
  %905 = vmatprep.subr.mxu0 0.0
  %906 = vmatpush1.msra.mxu0 0.0
  %907 = vmatprep.subr.mxu0 0.0
  %908 = vmatpush1.msra.mxu0 0.0
  %909 = vmatprep.mubr.f32.mxu0 0.0
  %910 = vmatmul.mubr.f32.gmra.mrb[0].mxu0 %v839
  %v911 = vpop.f32.mrb[0].mxu0
  %v912 = vadd.f32 0.0, %v911
  %v913 = vpop.f32.mrb[0].mxu0
  %914 = vdwg.mxu0
  %v915 = vld [vmem:[%s12] sm:$0xf]
  %v917 = vsel %vm837, %v915, 0
  %919 = vmatprep.subr.mxu0 0.0
  %920 = vmatpush1.msra.mxu0 %v828
  %921 = vmatprep.subr.mxu0 0.0
  %922 = vmatpush1.msra.mxu0 %v843
  %923 = vmatprep.subr.mxu0 0.0
  %924 = vmatpush1.msra.mxu0 0.0
  %925 = vmatprep.subr.mxu0 0.0
  %926 = vmatpush1.msra.mxu0 0.0
  %927 = vmatprep.subr.mxu0 0.0
  %928 = vmatpush1.msra.mxu0 0.0
  %929 = vmatprep.subr.mxu0 0.0
  %930 = vmatpush1.msra.mxu0 0.0
  %931 = vmatprep.subr.mxu0 0.0
  %932 = vmatpush1.msra.mxu0 0.0
  %933 = vmatprep.subr.mxu0 0.0
  %934 = vmatpush1.msra.mxu0 0.0
  %935 = vmatprep.subr.mxu0 0.0
  %936 = vmatpush1.msra.mxu0 0.0
  %937 = vmatprep.subr.mxu0 0.0
  %938 = vmatpush1.msra.mxu0 0.0
  %939 = vmatprep.subr.mxu0 0.0
  %940 = vmatpush1.msra.mxu0 0.0
  %941 = vmatprep.subr.mxu0 0.0
  %942 = vmatpush1.msra.mxu0 0.0
  %943 = vmatprep.subr.mxu0 0.0
  %944 = vmatpush1.msra.mxu0 0.0
  %945 = vmatprep.subr.mxu0 0.0
  %946 = vmatpush1.msra.mxu0 0.0
  %947 = vmatprep.subr.mxu0 0.0
  %948 = vmatpush1.msra.mxu0 0.0
  %949 = vmatprep.subr.mxu0 0.0
  %950 = vmatpush1.msra.mxu0 0.0
  %951 = vmatprep.subr.mxu0 0.0
  %952 = vmatpush1.msra.mxu0 0.0
  %953 = vmatprep.subr.mxu0 0.0
  %954 = vmatpush1.msra.mxu0 0.0
  %955 = vmatprep.subr.mxu0 0.0
  %956 = vmatpush1.msra.mxu0 0.0
  %957 = vmatprep.subr.mxu0 0.0
  %958 = vmatpush1.msra.mxu0 0.0
  %959 = vmatprep.subr.mxu0 0.0
  %960 = vmatpush1.msra.mxu0 0.0
  %961 = vmatprep.subr.mxu0 0.0
  %962 = vmatpush1.msra.mxu0 0.0
  %963 = vmatprep.subr.mxu0 0.0
  %964 = vmatpush1.msra.mxu0 0.0
  %965 = vmatprep.subr.mxu0 0.0
  %966 = vmatpush1.msra.mxu0 0.0
  %967 = vmatprep.subr.mxu0 0.0
  %968 = vmatpush1.msra.mxu0 0.0
  %969 = vmatprep.subr.mxu0 0.0
  %970 = vmatpush1.msra.mxu0 0.0
  %971 = vmatprep.subr.mxu0 0.0
  %972 = vmatpush1.msra.mxu0 0.0
  %973 = vmatprep.subr.mxu0 0.0
  %974 = vmatpush1.msra.mxu0 0.0
  %975 = vmatprep.subr.mxu0 0.0
  %976 = vmatpush1.msra.mxu0 0.0
  %977 = vmatprep.subr.mxu0 0.0
  %978 = vmatpush1.msra.mxu0 0.0
  %979 = vmatprep.subr.mxu0 0.0
  %980 = vmatpush1.msra.mxu0 0.0
  %981 = vmatprep.subr.mxu0 0.0
  %982 = vmatpush1.msra.mxu0 0.0
  %983 = vmatprep.mubr.f32.mxu0 0.0
  %984 = vmatmul.mubr.f32.gmra.mrb[0].mxu0 %v917
  %v985 = vpop.f32.mrb[0].mxu0
  %v986 = vadd.f32 0.0, %v985
  %v987 = vpop.f32.mrb[0].mxu0
  %988 = vdwg.mxu0
  %v989 = vmax.f32 %v912, %v986
  %v990 = vmax.f32 %v989, 0.0
  %vm991 = vcmask 257024
  %v992 = vsel %vm991, %v990, 0.0
  %v993 = vrot.slane %v992, 4
  %v994 = vadd.f32 %v992, %v993
  %v995 = vrot.slane %v994, 2
  %v996 = vadd.f32 %v994, %v995
  %v997 = vrot.slane %v996, 1
  %v998 = vadd.f32 %v996, %v997
  %v999 = vrcp.pop 4.0
  %v1000 = vmul.f32 %v998, %v999
  %v1001 = vsub.f32 %v990, %v1000
  %v1002 = vmul.f32 %v1001, %v1001
  %v1003 = vsel %vm991, %v1002, 0.0
  %v1004 = vrot.slane %v1003, 4
  %v1005 = vadd.f32 %v1003, %v1004
  %v1006 = vrot.slane %v1005, 2
  %v1007 = vadd.f32 %v1005, %v1006
  %v1008 = vrot.slane %v1007, 1
  %v1009 = vadd.f32 %v1007, %v1008
  %v1010 = vmul.f32 %v1009, %v999
  %v1011 = vadd.f32 %v1010, 1e-05
  %v1012 = vrsqrt.pop %v1011
  %v1013 = vmul.f32 %v1001, %v1012
  %v1014 = vld [vmem:[%s9] sm:$0x1]
  %v1016 = vlaneseq
  %v1017 = vshrl.u32 %v1016, 7
  %v1018 = vsub.s32 0, %v1017
  %v1019 = vrot.slane %v1014, %v1018
  %v1021 = vmul.f32 %v1013, %v1019
  %v1022 = vld [vmem:[%s10] sm:$0x1]
  %v1024 = vlaneseq
  %v1025 = vshrl.u32 %v1024, 7
  %v1026 = vsub.s32 0, %v1025
  %v1027 = vrot.slane %v1022, %v1026
  %v1029 = vadd.f32 %v1021, %v1027
  %vm1030 = vcmask 261120
  %1031 = vst.msk [vmem:[#allocation4] sm:$0xff] %vm1030, 0.0
  %vm1032 = vcmask 254976
  %1033 = vst.msk [vmem:[#allocation4 + $0x1] sm:$0x3] %vm1032, %v1029
  %vm1034 = vcmask 257026
  %1035 = vst.msk [vmem:[#allocation4 + $0x3] sm:$0xc] %vm1034, %v1029
  %v1036 = vld [vmem:[#allocation4] sm:$0xff]
  %1037 = vst [vmem:[#allocation5] sm:$0x3f] 0.0
  %1038 = vst [vmem:[#allocation5 + $0x8] sm:$0x3f] 0.0
  %1039 = vst [vmem:[#allocation5 + $0x10] sm:$0x3f] 0.0
  %vm1040 = vcmask 259072
  %1041 = vst.msk [vmem:[#allocation5] sm:$0x3f] %vm1040, %v1036
  %v1043 = vrot.slane %v1036, 1
  %1045 = vst.msk [vmem:[#allocation5 + $0x8] sm:$0x3f] %vm1040, %v1043
  %v1046 = vrot.slane %v1036, 2
  %1048 = vst.msk [vmem:[#allocation5 + $0x10] sm:$0x3f] %vm1040, %v1046
  %v1049 = vld [vmem:[#allocation5] sm:$0x3f]
  %v1050 = vld [vmem:[#allocation5 + $0x8] sm:$0x3f]
  %v1051 = vld [vmem:[#allocation5 + $0x10] sm:$0x3f]
  %v1052 = vld [vmem:[%s13] sm:$0xff]
  %v1053 = vld [vmem:[%s13 + $0x8] sm:$0xff]
  %v1054 = vld [vmem:[%s13 + $0x10] sm:$0xff]
  %v1055 = vld [vmem:[%s13 + $0x18] sm:$0xff]
  %v1056 = vld [vmem:[%s13 + $0x20] sm:$0xff]
  %v1057 = vld [vmem:[%s13 + $0x28] sm:$0xff]
  %v1058 = vld [vmem:[%s13 + $0x30] sm:$0xff]
  %v1059 = vld [vmem:[%s13 + $0x38] sm:$0xff]
  %v1060 = vld [vmem:[%s13 + $0x40] sm:$0xff]
  %v1061 = vld [vmem:[%s13 + $0x48] sm:$0xff]
  %v1062 = vld [vmem:[%s13 + $0x50] sm:$0xff]
  %v1063 = vld [vmem:[%s13 + $0x58] sm:$0xff]
  %v1064 = vld [vmem:[%s13 + $0x60] sm:$0xff]
  %v1065 = vld [vmem:[%s13 + $0x68] sm:$0xff]
  %v1066 = vld [vmem:[%s13 + $0x70] sm:$0xff]
  %v1067 = vld [vmem:[%s13 + $0x78] sm:$0xff]
  %v1068 = vld [vmem:[%s13 + $0x80] sm:$0xff]
  %v1069 = vld [vmem:[%s13 + $0x88] sm:$0xff]
  %v1070 = vld [vmem:[%s13 + $0x90] sm:$0xff]
  %v1071 = vld [vmem:[%s13 + $0x98] sm:$0xff]
  %v1072 = vld [vmem:[%s13 + $0xa0] sm:$0xff]
  %v1073 = vld [vmem:[%s13 + $0xa8] sm:$0xff]
  %v1074 = vld [vmem:[%s13 + $0xb0] sm:$0xff]
  %v1075 = vld [vmem:[%s13 + $0xb8] sm:$0xff]
  %v1076 = vld [vmem:[%s13 + $0xc0] sm:$0xff]
  %v1077 = vld [vmem:[%s13 + $0xc8] sm:$0xff]
  %v1078 = vld [vmem:[%s13 + $0xd0] sm:$0xff]
  %v1079 = vld [vmem:[%s13 + $0xd8] sm:$0xff]
  %v1080 = vld [vmem:[%s13 + $0xe0] sm:$0xff]
  %v1081 = vld [vmem:[%s13 + $0xe8] sm:$0xff]
  %v1082 = vld [vmem:[%s13 + $0xf0] sm:$0xff]
  %v1083 = vld [vmem:[%s13 + $0xf8] sm:$0xff]
  %v1084 = vld [vmem:[%s13 + $0x100] sm:$0xff]
  %v1085 = vld [vmem:[%s13 + $0x108] sm:$0xff]
  %v1086 = vld [vmem:[%s13 + $0x110] sm:$0xff]
  %v1087 = vld [vmem:[%s13 + $0x118] sm:$0xff]
  %v1088 = vld [vmem:[%s13 + $0x120] sm:$0xff]
  %v1089 = vld [vmem:[%s13 + $0x128] sm:$0xff]
  %v1090 = vld [vmem:[%s13 + $0x130] sm:$0xff]
  %v1091 = vld [vmem:[%s13 + $0x138] sm:$0xff]
  %v1092 = vld [vmem:[%s13 + $0x140] sm:$0xff]
  %v1093 = vld [vmem:[%s13 + $0x148] sm:$0xff]
  %v1094 = vld [vmem:[%s13 + $0x150] sm:$0xff]
  %v1095 = vld [vmem:[%s13 + $0x158] sm:$0xff]
  %v1096 = vld [vmem:[%s13 + $0x160] sm:$0xff]
  %v1097 = vld [vmem:[%s13 + $0x168] sm:$0xff]
  %v1098 = vld [vmem:[%s13 + $0x170] sm:$0xff]
  %v1099 = vld [vmem:[%s13 + $0x178] sm:$0xff]
  %v1100 = vld [vmem:[%s14] sm:$0x1]
  %v1102 = vlaneseq
  %v1103 = vshrl.u32 %v1102, 7
  %v1104 = vsub.s32 0, %v1103
  %v1105 = vrot.slane %v1100, %v1104
  %1107 = vmatprep.subr.mxu0 0.0
  %1108 = vmatpush1.msra.mxu0 %v1052
  %1109 = vmatprep.subr.mxu0 0.0
  %1110 = vmatpush1.msra.mxu0 %v1053
  %1111 = vmatprep.subr.mxu0 0.0
  %1112 = vmatpush1.msra.mxu0 %v1054
  %1113 = vmatprep.subr.mxu0 0.0
  %1114 = vmatpush1.msra.mxu0 %v1055
  %1115 = vmatprep.subr.mxu0 0.0
  %1116 = vmatpush1.msra.mxu0 %v1056
  %1117 = vmatprep.subr.mxu0 0.0
  %1118 = vmatpush1.msra.mxu0 %v1057
  %1119 = vmatprep.subr.mxu0 0.0
  %1120 = vmatpush1.msra.mxu0 %v1058
  %1121 = vmatprep.subr.mxu0 0.0
  %1122 = vmatpush1.msra.mxu0 %v1059
  %1123 = vmatprep.subr.mxu0 0.0
  %1124 = vmatpush1.msra.mxu0 %v1060
  %1125 = vmatprep.subr.mxu0 0.0
  %1126 = vmatpush1.msra.mxu0 %v1061
  %1127 = vmatprep.subr.mxu0 0.0
  %1128 = vmatpush1.msra.mxu0 %v1062
  %1129 = vmatprep.subr.mxu0 0.0
  %1130 = vmatpush1.msra.mxu0 %v1063
  %1131 = vmatprep.subr.mxu0 0.0
  %1132 = vmatpush1.msra.mxu0 %v1064
  %1133 = vmatprep.subr.mxu0 0.0
  %1134 = vmatpush1.msra.mxu0 %v1065
  %1135 = vmatprep.subr.mxu0 0.0
  %1136 = vmatpush1.msra.mxu0 %v1066
  %1137 = vmatprep.subr.mxu0 0.0
  %1138 = vmatpush1.msra.mxu0 %v1067
  %1139 = vmatprep.subr.mxu0 0.0
  %1140 = vmatpush1.msra.mxu0 %v1068
  %1141 = vmatprep.subr.mxu0 0.0
  %1142 = vmatpush1.msra.mxu0 %v1069
  %1143 = vmatprep.subr.mxu0 0.0
  %1144 = vmatpush1.msra.mxu0 %v1070
  %1145 = vmatprep.subr.mxu0 0.0
  %1146 = vmatpush1.msra.mxu0 %v1071
  %1147 = vmatprep.subr.mxu0 0.0
  %1148 = vmatpush1.msra.mxu0 %v1072
  %1149 = vmatprep.subr.mxu0 0.0
  %1150 = vmatpush1.msra.mxu0 %v1073
  %1151 = vmatprep.subr.mxu0 0.0
  %1152 = vmatpush1.msra.mxu0 %v1074
  %1153 = vmatprep.subr.mxu0 0.0
  %1154 = vmatpush1.msra.mxu0 %v1075
  %1155 = vmatprep.subr.mxu0 0.0
  %1156 = vmatpush1.msra.mxu0 %v1076
  %1157 = vmatprep.subr.mxu0 0.0
  %1158 = vmatpush1.msra.mxu0 %v1077
  %1159 = vmatprep.subr.mxu0 0.0
  %1160 = vmatpush1.msra.mxu0 %v1078
  %1161 = vmatprep.subr.mxu0 0.0
  %1162 = vmatpush1.msra.mxu0 %v1079
  %1163 = vmatprep.subr.mxu0 0.0
  %1164 = vmatpush1.msra.mxu0 %v1080
  %1165 = vmatprep.subr.mxu0 0.0
  %1166 = vmatpush1.msra.mxu0 %v1081
  %1167 = vmatprep.subr.mxu0 0.0
  %1168 = vmatpush1.msra.mxu0 %v1082
  %1169 = vmatprep.subr.mxu0 0.0
  %1170 = vmatpush1.msra.mxu0 %v1083
  %1171 = vmatprep.mubr.f32.mxu0 %v1050
  %1172 = vmatmul.mubr.f32.gmra.mrb[0].mxu0 %v1049
  %v1173 = vpop.f32.mrb[0].mxu0
  %v1174 = vadd.f32 %v1105, %v1173
  %v1175 = vpop.f32.mrb[0].mxu0
  %1176 = vdwg.mxu0
  %1177 = vmatprep.subr.mxu0 0.0
  %1178 = vmatpush1.msra.mxu0 %v1084
  %1179 = vmatprep.subr.mxu0 0.0
  %1180 = vmatpush1.msra.mxu0 %v1085
  %1181 = vmatprep.subr.mxu0 0.0
  %1182 = vmatpush1.msra.mxu0 %v1086
  %1183 = vmatprep.subr.mxu0 0.0
  %1184 = vmatpush1.msra.mxu0 %v1087
  %1185 = vmatprep.subr.mxu0 0.0
  %1186 = vmatpush1.msra.mxu0 %v1088
  %1187 = vmatprep.subr.mxu0 0.0
  %1188 = vmatpush1.msra.mxu0 %v1089
  %1189 = vmatprep.subr.mxu0 0.0
  %1190 = vmatpush1.msra.mxu0 %v1090
  %1191 = vmatprep.subr.mxu0 0.0
  %1192 = vmatpush1.msra.mxu0 %v1091
  %1193 = vmatprep.subr.mxu0 0.0
  %1194 = vmatpush1.msra.mxu0 %v1092
  %1195 = vmatprep.subr.mxu0 0.0
  %1196 = vmatpush1.msra.mxu0 %v1093
  %1197 = vmatprep.subr.mxu0 0.0
  %1198 = vmatpush1.msra.mxu0 %v1094
  %1199 = vmatprep.subr.mxu0 0.0
  %1200 = vmatpush1.msra.mxu0 %v1095
  %1201 = vmatprep.subr.mxu0 0.0
  %1202 = vmatpush1.msra.mxu0 %v1096
  %1203 = vmatprep.subr.mxu0 0.0
  %1204 = vmatpush1.msra.mxu0 %v1097
  %1205 = vmatprep.subr.mxu0 0.0
  %1206 = vmatpush1.msra.mxu0 %v1098
  %1207 = vmatprep.subr.mxu0 0.0
  %1208 = vmatpush1.msra.mxu0 %v1099
  %1209 = vmatprep.subr.mxu0 0.0
  %1210 = vmatpush1.msra.mxu0 0.0
  %1211 = vmatprep.subr.mxu0 0.0
  %1212 = vmatpush1.msra.mxu0 0.0
  %1213 = vmatprep.subr.mxu0 0.0
  %1214 = vmatpush1.msra.mxu0 0.0
  %1215 = vmatprep.subr.mxu0 0.0
  %1216 = vmatpush1.msra.mxu0 0.0
  %1217 = vmatprep.subr.mxu0 0.0
  %1218 = vmatpush1.msra.mxu0 0.0
  %1219 = vmatprep.subr.mxu0 0.0
  %1220 = vmatpush1.msra.mxu0 0.0
  %1221 = vmatprep.subr.mxu0 0.0
  %1222 = vmatpush1.msra.mxu0 0.0
  %1223 = vmatprep.subr.mxu0 0.0
  %1224 = vmatpush1.msra.mxu0 0.0
  %1225 = vmatprep.subr.mxu0 0.0
  %1226 = vmatpush1.msra.mxu0 0.0
  %1227 = vmatprep.subr.mxu0 0.0
  %1228 = vmatpush1.msra.mxu0 0.0
  %1229 = vmatprep.subr.mxu0 0.0
  %1230 = vmatpush1.msra.mxu0 0.0
  %1231 = vmatprep.subr.mxu0 0.0
  %1232 = vmatpush1.msra.mxu0 0.0
  %1233 = vmatprep.subr.mxu0 0.0
  %1234 = vmatpush1.msra.mxu0 0.0
  %1235 = vmatprep.subr.mxu0 0.0
  %1236 = vmatpush1.msra.mxu0 0.0
  %1237 = vmatprep.subr.mxu0 0.0
  %1238 = vmatpush1.msra.mxu0 0.0
  %1239 = vmatprep.subr.mxu0 0.0
  %1240 = vmatpush1.msra.mxu0 0.0
  %1241 = vmatprep.mubr.f32.mxu0 0.0
  %1242 = vmatmul.mubr.f32.gmra.mrb[0].mxu0 %v1051
  %v1243 = vpop.f32.mrb[0].mxu0
  %v1244 = vadd.f32 %v1174, %v1243
  %v1245 = vpop.f32.mrb[0].mxu0
  %1246 = vdwg.mxu0
  %v1247 = vld [vmem:[%s17] sm:$0x3]
  %vm1248 = vcmask 48128
  %v1250 = vsel %vm1248, %v1247, 0
  %v1253 = vsel %vm124, %v1244, 0
  %1255 = vmatprep.subr.mxu0 0.0
  %1256 = vmatpush1.msra.mxu0 %v1253
  %1257 = vmatprep.subr.mxu0 0.0
  %1258 = vmatpush1.msra.mxu0 0.0
  %1259 = vmatprep.subr.mxu0 0.0
  %1260 = vmatpush1.msra.mxu0 0.0
  %1261 = vmatprep.subr.mxu0 0.0
  %1262 = vmatpush1.msra.mxu0 0.0
  %1263 = vmatprep.subr.mxu0 0.0
  %1264 = vmatpush1.msra.mxu0 0.0
  %1265 = vmatprep.subr.mxu0 0.0
  %1266 = vmatpush1.msra.mxu0 0.0
  %1267 = vmatprep.subr.mxu0 0.0
  %1268 = vmatpush1.msra.mxu0 0.0
  %1269 = vmatprep.subr.mxu0 0.0
  %1270 = vmatpush1.msra.mxu0 0.0
  %1271 = vmatprep.subr.mxu0 0.0
  %1272 = vmatpush1.msra.mxu0 0.0
  %1273 = vmatprep.subr.mxu0 0.0
  %1274 = vmatpush1.msra.mxu0 0.0
  %1275 = vmatprep.subr.mxu0 0.0
  %1276 = vmatpush1.msra.mxu0 0.0
  %1277 = vmatprep.subr.mxu0 0.0
  %1278 = vmatpush1.msra.mxu0 0.0
  %1279 = vmatprep.subr.mxu0 0.0
  %1280 = vmatpush1.msra.mxu0 0.0
  %1281 = vmatprep.subr.mxu0 0.0
  %1282 = vmatpush1.msra.mxu0 0.0
  %1283 = vmatprep.subr.mxu0 0.0
  %1284 = vmatpush1.msra.mxu0 0.0
  %1285 = vmatprep.subr.mxu0 0.0
  %1286 = vmatpush1.msra.mxu0 0.0
  %1287 = vmatprep.subr.mxu0 0.0
  %1288 = vmatpush1.msra.mxu0 0.0
  %1289 = vmatprep.subr.mxu0 0.0
  %1290 = vmatpush1.msra.mxu0 0.0
  %1291 = vmatprep.subr.mxu0 0.0
  %1292 = vmatpush1.msra.mxu0 0.0
  %1293 = vmatprep.subr.mxu0 0.0
  %1294 = vmatpush1.msra.mxu0 0.0
  %1295 = vmatprep.subr.mxu0 0.0
  %1296 = vmatpush1.msra.mxu0 0.0
  %1297 = vmatprep.subr.mxu0 0.0
  %1298 = vmatpush1.msra.mxu0 0.0
  %1299 = vmatprep.subr.mxu0 0.0
  %1300 = vmatpush1.msra.mxu0 0.0
  %1301 = vmatprep.subr.mxu0 0.0
  %1302 = vmatpush1.msra.mxu0 0.0
  %1303 = vmatprep.subr.mxu0 0.0
  %1304 = vmatpush1.msra.mxu0 0.0
  %1305 = vmatprep.subr.mxu0 0.0
  %1306 = vmatpush1.msra.mxu0 0.0
  %1307 = vmatprep.subr.mxu0 0.0
  %1308 = vmatpush1.msra.mxu0 0.0
  %1309 = vmatprep.subr.mxu0 0.0
  %1310 = vmatpush1.msra.mxu0 0.0
  %1311 = vmatprep.subr.mxu0 0.0
  %1312 = vmatpush1.msra.mxu0 0.0
  %1313 = vmatprep.subr.mxu0 0.0
  %1314 = vmatpush1.msra.mxu0 0.0
  %1315 = vmatprep.subr.mxu0 0.0
  %1316 = vmatpush1.msra.mxu0 0.0
  %1317 = vmatprep.subr.mxu0 0.0
  %1318 = vmatpush1.msra.mxu0 0.0
  %1319 = vmatprep.mubr.f32.mxu0 0.0
  %1320 = vmatmul.mubr.f32.gmra.mrb[0].mxu0 %v1250
  %v1321 = vpop.f32.mrb[0].mxu0
  %v1322 = vadd.f32 0.0, %v1321
  %v1323 = vpop.f32.mrb[0].mxu0
  %1324 = vdwg.mxu0
  %v1325 = vld [vmem:[%s18] sm:$0x3]
  %v1327 = vsel %vm1248, %v1325, 0
  %1329 = vmatprep.subr.mxu0 0.0
  %1330 = vmatpush1.msra.mxu0 %v1253
  %1331 = vmatprep.subr.mxu0 0.0
  %1332 = vmatpush1.msra.mxu0 0.0
  %1333 = vmatprep.subr.mxu0 0.0
  %1334 = vmatpush1.msra.mxu0 0.0
  %1335 = vmatprep.subr.mxu0 0.0
  %1336 = vmatpush1.msra.mxu0 0.0
  %1337 = vmatprep.subr.mxu0 0.0
  %1338 = vmatpush1.msra.mxu0 0.0
  %1339 = vmatprep.subr.mxu0 0.0
  %1340 = vmatpush1.msra.mxu0 0.0
  %1341 = vmatprep.subr.mxu0 0.0
  %1342 = vmatpush1.msra.mxu0 0.0
  %1343 = vmatprep.subr.mxu0 0.0
  %1344 = vmatpush1.msra.mxu0 0.0
  %1345 = vmatprep.subr.mxu0 0.0
  %1346 = vmatpush1.msra.mxu0 0.0
  %1347 = vmatprep.subr.mxu0 0.0
  %1348 = vmatpush1.msra.mxu0 0.0
  %1349 = vmatprep.subr.mxu0 0.0
  %1350 = vmatpush1.msra.mxu0 0.0
  %1351 = vmatprep.subr.mxu0 0.0
  %1352 = vmatpush1.msra.mxu0 0.0
  %1353 = vmatprep.subr.mxu0 0.0
  %1354 = vmatpush1.msra.mxu0 0.0
  %1355 = vmatprep.subr.mxu0 0.0
  %1356 = vmatpush1.msra.mxu0 0.0
  %1357 = vmatprep.subr.mxu0 0.0
  %1358 = vmatpush1.msra.mxu0 0.0
  %1359 = vmatprep.subr.mxu0 0.0
  %1360 = vmatpush1.msra.mxu0 0.0
  %1361 = vmatprep.subr.mxu0 0.0
  %1362 = vmatpush1.msra.mxu0 0.0
  %1363 = vmatprep.subr.mxu0 0.0
  %1364 = vmatpush1.msra.mxu0 0.0
  %1365 = vmatprep.subr.mxu0 0.0
  %1366 = vmatpush1.msra.mxu0 0.0
  %1367 = vmatprep.subr.mxu0 0.0
  %1368 = vmatpush1.msra.mxu0 0.0
  %1369 = vmatprep.subr.mxu0 0.0
  %1370 = vmatpush1.msra.mxu0 0.0
  %1371 = vmatprep.subr.mxu0 0.0
  %1372 = vmatpush1.msra.mxu0 0.0
  %1373 = vmatprep.subr.mxu0 0.0
  %1374 = vmatpush1.msra.mxu0 0.0
  %1375 = vmatprep.subr.mxu0 0.0
  %1376 = vmatpush1.msra.mxu0 0.0
  %1377 = vmatprep.subr.mxu0 0.0
  %1378 = vmatpush1.msra.mxu0 0.0
  %1379 = vmatprep.subr.mxu0 0.0
  %1380 = vmatpush1.msra.mxu0 0.0
  %1381 = vmatprep.subr.mxu0 0.0
  %1382 = vmatpush1.msra.mxu0 0.0
  %1383 = vmatprep.subr.mxu0 0.0
  %1384 = vmatpush1.msra.mxu0 0.0
  %1385 = vmatprep.subr.mxu0 0.0
  %1386 = vmatpush1.msra.mxu0 0.0
  %1387 = vmatprep.subr.mxu0 0.0
  %1388 = vmatpush1.msra.mxu0 0.0
  %1389 = vmatprep.subr.mxu0 0.0
  %1390 = vmatpush1.msra.mxu0 0.0
  %1391 = vmatprep.subr.mxu0 0.0
  %1392 = vmatpush1.msra.mxu0 0.0
  %1393 = vmatprep.mubr.f32.mxu0 0.0
  %1394 = vmatmul.mubr.f32.gmra.mrb[0].mxu0 %v1327
  %v1395 = vpop.f32.mrb[0].mxu0
  %v1396 = vadd.f32 0.0, %v1395
  %v1397 = vpop.f32.mrb[0].mxu0
  %1398 = vdwg.mxu0
  %v1399 = vmax.f32 %v1322, %v1396
  %v1400 = vmax.f32 %v1399, 0.0
  %vm1401 = vcmask 517120
  %v1402 = vsel %vm1401, %v1400, 0.0
  %v1403 = vrot.slane %v1402, 4
  %v1404 = vadd.f32 %v1402, %v1403
  %v1405 = vrot.slane %v1404, 2
  %v1406 = vadd.f32 %v1404, %v1405
  %v1407 = vrot.slane %v1406, 1
  %v1408 = vadd.f32 %v1406, %v1407
  %v1409 = vrcp.pop 2.0
  %v1410 = vmul.f32 %v1408, %v1409
  %v1411 = vsub.f32 %v1400, %v1410
  %v1412 = vmul.f32 %v1411, %v1411
  %v1413 = vsel %vm1401, %v1412, 0.0
  %v1414 = vrot.slane %v1413, 4
  %v1415 = vadd.f32 %v1413, %v1414
  %v1416 = vrot.slane %v1415, 2
  %v1417 = vadd.f32 %v1415, %v1416
  %v1418 = vrot.slane %v1417, 1
  %v1419 = vadd.f32 %v1417, %v1418
  %v1420 = vmul.f32 %v1419, %v1409
  %v1421 = vadd.f32 %v1420, 1e-05
  %v1422 = vrsqrt.pop %v1421
  %v1423 = vmul.f32 %v1411, %v1422
  %v1424 = vld [vmem:[%s15] sm:$0x1]
  %v1426 = vlaneseq
  %v1427 = vshrl.u32 %v1426, 7
  %v1428 = vsub.s32 0, %v1427
  %v1429 = vrot.slane %v1424, %v1428
  %v1431 = vmul.f32 %v1423, %v1429
  %v1432 = vld [vmem:[%s16] sm:$0x1]
  %v1434 = vlaneseq
  %v1435 = vshrl.u32 %v1434, 7
  %v1436 = vsub.s32 0, %v1435
  %v1437 = vrot.slane %v1432, %v1436
  %v1439 = vadd.f32 %v1431, %v1437
  %v1440 = vld [vmem:[%s20] sm:$0xff]
  %v1441 = vld [vmem:[%s20 + $0x8] sm:$0xff]
  %v1442 = vld [vmem:[%s20 + $0x10] sm:$0xff]
  %v1443 = vld [vmem:[%s20 + $0x18] sm:$0xff]
  %v1444 = vld [vmem:[%s20 + $0x20] sm:$0xff]
  %v1445 = vld [vmem:[%s20 + $0x28] sm:$0xff]
  %v1446 = vld [vmem:[%s20 + $0x30] sm:$0xff]
  %v1447 = vld [vmem:[%s20 + $0x38] sm:$0xff]
  %v1448 = vld [vmem:[%s22] sm:$0x1]
  %v1450 = vlaneseq
  %v1451 = vshrl.u32 %v1450, 7
  %v1452 = vsub.s32 0, %v1451
  %v1453 = vrot.slane %v1448, %v1452
  %vm1455 = vcmask 523264
  %v1457 = vsel %vm1455, %v1439, 0
  %1459 = vmatprep.subr.mxu0 0.0
  %1460 = vmatpush1.msra.mxu0 %v1440
  %1461 = vmatprep.subr.mxu0 0.0
  %1462 = vmatpush1.msra.mxu0 %v1441
  %1463 = vmatprep.subr.mxu0 0.0
  %1464 = vmatpush1.msra.mxu0 %v1442
  %1465 = vmatprep.subr.mxu0 0.0
  %1466 = vmatpush1.msra.mxu0 %v1443
  %1467 = vmatprep.subr.mxu0 0.0
  %1468 = vmatpush1.msra.mxu0 %v1444
  %1469 = vmatprep.subr.mxu0 0.0
  %1470 = vmatpush1.msra.mxu0 %v1445
  %1471 = vmatprep.subr.mxu0 0.0
  %1472 = vmatpush1.msra.mxu0 %v1446
  %1473 = vmatprep.subr.mxu0 0.0
  %1474 = vmatpush1.msra.mxu0 %v1447
  %1475 = vmatprep.subr.mxu0 0.0
  %1476 = vmatpush1.msra.mxu0 0.0
  %1477 = vmatprep.subr.mxu0 0.0
  %1478 = vmatpush1.msra.mxu0 0.0
  %1479 = vmatprep.subr.mxu0 0.0
  %1480 = vmatpush1.msra.mxu0 0.0
  %1481 = vmatprep.subr.mxu0 0.0
  %1482 = vmatpush1.msra.mxu0 0.0
  %1483 = vmatprep.subr.mxu0 0.0
  %1484 = vmatpush1.msra.mxu0 0.0
  %1485 = vmatprep.subr.mxu0 0.0
  %1486 = vmatpush1.msra.mxu0 0.0
  %1487 = vmatprep.subr.mxu0 0.0
  %1488 = vmatpush1.msra.mxu0 0.0
  %1489 = vmatprep.subr.mxu0 0.0
  %1490 = vmatpush1.msra.mxu0 0.0
  %1491 = vmatprep.subr.mxu0 0.0
  %1492 = vmatpush1.msra.mxu0 0.0
  %1493 = vmatprep.subr.mxu0 0.0
  %1494 = vmatpush1.msra.mxu0 0.0
  %1495 = vmatprep.subr.mxu0 0.0
  %1496 = vmatpush1.msra.mxu0 0.0
  %1497 = vmatprep.subr.mxu0 0.0
  %1498 = vmatpush1.msra.mxu0 0.0
  %1499 = vmatprep.subr.mxu0 0.0
  %1500 = vmatpush1.msra.mxu0 0.0
  %1501 = vmatprep.subr.mxu0 0.0
  %1502 = vmatpush1.msra.mxu0 0.0
  %1503 = vmatprep.subr.mxu0 0.0
  %1504 = vmatpush1.msra.mxu0 0.0
  %1505 = vmatprep.subr.mxu0 0.0
  %1506 = vmatpush1.msra.mxu0 0.0
  %1507 = vmatprep.subr.mxu0 0.0
  %1508 = vmatpush1.msra.mxu0 0.0
  %1509 = vmatprep.subr.mxu0 0.0
  %1510 = vmatpush1.msra.mxu0 0.0
  %1511 = vmatprep.subr.mxu0 0.0
  %1512 = vmatpush1.msra.mxu0 0.0
  %1513 = vmatprep.subr.mxu0 0.0
  %1514 = vmatpush1.msra.mxu0 0.0
  %1515 = vmatprep.subr.mxu0 0.0
  %1516 = vmatpush1.msra.mxu0 0.0
  %1517 = vmatprep.subr.mxu0 0.0
  %1518 = vmatpush1.msra.mxu0 0.0
  %1519 = vmatprep.subr.mxu0 0.0
  %1520 = vmatpush1.msra.mxu0 0.0
  %1521 = vmatprep.subr.mxu0 0.0
  %1522 = vmatpush1.msra.mxu0 0.0
  %1523 = vmatprep.mubr.f32.mxu0 0.0
  %1524 = vmatmul.mubr.f32.gmra.mrb[0].mxu0 %v1457
  %v1525 = vpop.f32.mrb[0].mxu0
  %v1526 = vadd.f32 %v1453, %v1525
  %v1527 = vpop.f32.mrb[0].mxu0
  %1528 = vdwg.mxu0
  %v1529 = vtanh.pop %v1526
  %v1530 = vld [vmem:[%s23] sm:$0xff]
  %v1531 = vld [vmem:[%s23 + $0x8] sm:$0xff]
  %v1532 = vld [vmem:[%s23 + $0x10] sm:$0xff]
  %v1533 = vld [vmem:[%s23 + $0x18] sm:$0xff]
  %v1534 = vld [vmem:[%s23 + $0x20] sm:$0xff]
  %v1535 = vld [vmem:[%s23 + $0x28] sm:$0xff]
  %v1536 = vld [vmem:[%s23 + $0x30] sm:$0xff]
  %v1537 = vld [vmem:[%s23 + $0x38] sm:$0xff]
  %v1538 = vld [vmem:[%s23 + $0x40] sm:$0xff]
  %v1539 = vld [vmem:[%s23 + $0x48] sm:$0xff]
  %v1540 = vld [vmem:[%s23 + $0x50] sm:$0xff]
  %v1541 = vld [vmem:[%s23 + $0x58] sm:$0xff]
  %v1542 = vld [vmem:[%s23 + $0x60] sm:$0xff]
  %v1543 = vld [vmem:[%s23 + $0x68] sm:$0xff]
  %v1544 = vld [vmem:[%s23 + $0x70] sm:$0xff]
  %v1545 = vld [vmem:[%s23 + $0x78] sm:$0xff]
  %v1546 = vld [vmem:[#allocation6] sm:$0x1]
  %v1548 = vlaneseq
  %v1549 = vshrl.u32 %v1548, 7
  %v1550 = vsub.s32 0, %v1549
  %v1551 = vrot.slane %v1546, %v1550
  %1553 = vmatprep.subr.mxu0 0.0
  %1554 = vmatpush1.msra.mxu0 %v1530
  %1555 = vmatprep.subr.mxu0 0.0
  %1556 = vmatpush1.msra.mxu0 %v1531
  %1557 = vmatprep.subr.mxu0 0.0
  %1558 = vmatpush1.msra.mxu0 %v1532
  %1559 = vmatprep.subr.mxu0 0.0
  %1560 = vmatpush1.msra.mxu0 %v1533
  %1561 = vmatprep.subr.mxu0 0.0
  %1562 = vmatpush1.msra.mxu0 %v1534
  %1563 = vmatprep.subr.mxu0 0.0
  %1564 = vmatpush1.msra.mxu0 %v1535
  %1565 = vmatprep.subr.mxu0 0.0
  %1566 = vmatpush1.msra.mxu0 %v1536
  %1567 = vmatprep.subr.mxu0 0.0
  %1568 = vmatpush1.msra.mxu0 %v1537
  %1569 = vmatprep.subr.mxu0 0.0
  %1570 = vmatpush1.msra.mxu0 %v1538
  %1571 = vmatprep.subr.mxu0 0.0
  %1572 = vmatpush1.msra.mxu0 %v1539
  %1573 = vmatprep.subr.mxu0 0.0
  %1574 = vmatpush1.msra.mxu0 %v1540
  %1575 = vmatprep.subr.mxu0 0.0
  %1576 = vmatpush1.msra.mxu0 %v1541
  %1577 = vmatprep.subr.mxu0 0.0
  %1578 = vmatpush1.msra.mxu0 %v1542
  %1579 = vmatprep.subr.mxu0 0.0
  %1580 = vmatpush1.msra.mxu0 %v1543
  %1581 = vmatprep.subr.mxu0 0.0
  %1582 = vmatpush1.msra.mxu0 %v1544
  %1583 = vmatprep.subr.mxu0 0.0
  %1584 = vmatpush1.msra.mxu0 %v1545
  %1585 = vmatprep.subr.mxu0 0.0
  %1586 = vmatpush1.msra.mxu0 0.0
  %1587 = vmatprep.subr.mxu0 0.0
  %1588 = vmatpush1.msra.mxu0 0.0
  %1589 = vmatprep.subr.mxu0 0.0
  %1590 = vmatpush1.msra.mxu0 0.0
  %1591 = vmatprep.subr.mxu0 0.0
  %1592 = vmatpush1.msra.mxu0 0.0
  %1593 = vmatprep.subr.mxu0 0.0
  %1594 = vmatpush1.msra.mxu0 0.0
  %1595 = vmatprep.subr.mxu0 0.0
  %1596 = vmatpush1.msra.mxu0 0.0
  %1597 = vmatprep.subr.mxu0 0.0
  %1598 = vmatpush1.msra.mxu0 0.0
  %1599 = vmatprep.subr.mxu0 0.0
  %1600 = vmatpush1.msra.mxu0 0.0
  %1601 = vmatprep.subr.mxu0 0.0
  %1602 = vmatpush1.msra.mxu0 0.0
  %1603 = vmatprep.subr.mxu0 0.0
  %1604 = vmatpush1.msra.mxu0 0.0
  %1605 = vmatprep.subr.mxu0 0.0
  %1606 = vmatpush1.msra.mxu0 0.0
  %1607 = vmatprep.subr.mxu0 0.0
  %1608 = vmatpush1.msra.mxu0 0.0
  %1609 = vmatprep.subr.mxu0 0.0
  %1610 = vmatpush1.msra.mxu0 0.0
  %1611 = vmatprep.subr.mxu0 0.0
  %1612 = vmatpush1.msra.mxu0 0.0
  %1613 = vmatprep.subr.mxu0 0.0
  %1614 = vmatpush1.msra.mxu0 0.0
  %1615 = vmatprep.subr.mxu0 0.0
  %1616 = vmatpush1.msra.mxu0 0.0
  %1617 = vmatprep.mubr.f32.mxu0 0.0
  %1618 = vmatmul.mubr.f32.gmra.mrb[0].mxu0 %v1529
  %v1619 = vpop.f32.mrb[0].mxu0
  %v1620 = vadd.f32 %v1551, %v1619
  %v1621 = vpop.f32.mrb[0].mxu0
  %1622 = vdwg.mxu0
  %v1623 = vxor.u32 %v1620, 2147483648
  %v1624 = vmul.f32 %v1623, 1.442695
  %v1625 = vpow.pop %v1624
  %v1626 = vadd.f32 %v1625, 1.0
  %v1627 = vrcp.pop %v1626
  %v1628 = vmul.f32 1.0, %v1627
  %vm1629 = vcmask 1024
  %1630 = vst.msk [vmem:[%s25] sm:$0x3] %vm1629, %v1628
  // Predicated region
  $region102: #{tpu_custom_call.1} parent=0 // pred_check
    _
  $region103: #{tpu_custom_call.1} parent=0 // pred_check_branch
    %1632 = sbr.rel (0) target = $region105
  $region104: #{tpu_custom_call.1} parent=0 // pred_region
    _
  $region105: #{tpu_custom_call.1} parent=0 // pred_fallthru
    _
  // Predicated region
  $region106: #{tpu_custom_call.1} parent=0 // pred_check
    _
  $region107: #{tpu_custom_call.1} parent=0 // pred_check_branch
    %1634 = sbr.rel (0) target = $region109
  $region108: #{tpu_custom_call.1} parent=0 // pred_region
    _
  $region109: #{tpu_custom_call.1} parent=0 // pred_fallthru
    _

</llo_original>
